<compile_context>
chip_gen: v7x
topology: tpu7x:2x2x1
jax: 0.10.0
libtpu: 0.0.40
codegen_flags: <defaults>
</compile_context>

<pallas_src>
import math

import jax
import jax.numpy as jnp
from jax.experimental import pallas as pl
from jax.experimental.pallas import tpu as pltpu  # noqa: F401

# ---- model hyper-params (small, consistent with the module) ----------------
B = 2          # batch
S = 8          # seq_len
F = 4          # num_features
D = 32         # n_dim_model
H = 4          # num_heads
L = 2          # num_encoder_layers
DFF = 64       # TransformerEncoderLayer dim_feedforward (torch default 2048, scaled)
DFC = 64       # fc_dim of the MLP head (== DFF so it packs into the same slab)
DOUT = 7       # output_dim
DOUT_PAD = 128 # lane-dense padded output width (sliced back to DOUT in wrapper)
EPS = 1e-5     # LayerNorm eps (torch default)
DH = D // H
BS = B * S
HBS = H * BS
NEG = -1e30    # additive mask value for cross-example attention

# packed D-wide parameter slab layout:
#   row 0: b_emb, row 1: final-norm gamma, row 2: final-norm beta
#   per layer l, base = 3 + 9*l:
#     +0 b_q, +1 b_k, +2 b_v, +3 b_out, +4 ln1_g, +5 ln1_b,
#     +6 b_ff2, +7 ln2_g, +8 ln2_b
ND_ROWS = 3 + 9 * L
# packed DFF-wide slab: rows 0..L-1 = b_ff1[l], row L = b_fc1
NF_ROWS = L + 1


def _layernorm(x, g, b):
    mu = jnp.mean(x, axis=-1, keepdims=True)
    var = jnp.mean(jnp.square(x - mu), axis=-1, keepdims=True)
    return (x - mu) * jax.lax.rsqrt(var + EPS) * g + b


def encoder_kernel(src_ref, pe_ref, w_emb_ref,
                   w_attn_ref, w_ff1_ref, w_ff2_ref, w_fc2_ref,
                   bias_d_ref, bias_f_ref, b_fc2_ref,
                   hmask_ref, abias_ref,
                   out_ref):
    f32 = jnp.float32

    def brow(ref, i):                 # static (1, width) row slice of a slab
        return ref[i:i + 1, :]

    # static, precomputed masks (hoisted out of the kernel prologue)
    hmask = hmask_ref[...]            # (H*BS, D)  head block-column mask
    abias = abias_ref[...]            # (H*BS, BS) block-diag bias, tiled over heads

    # ---- feature embedding + positional encoding ----
    x = (jnp.dot(src_ref[...], w_emb_ref[...], preferred_element_type=f32)
         + brow(bias_d_ref, 0) + pe_ref[...])
    # TODO(synk): all dropout layers are inference-mode identities (eval mode).

    scale = 1.0 / math.sqrt(DH)

    for l in range(L):                               # static unrolled layer loop
        base = 3 + 9 * l

        # ---- multi-head self attention (no src_mask in the reference forward) ----
        # fused lane-dense in-projection: [Wq|Wk|Wv|Wo] in one (D,128) slab
        w_all = w_attn_ref[l]                        # (D, 128)
        qkvo = jnp.dot(x, w_all, preferred_element_type=f32)     # (BS, 128)
        q = qkvo[:, 0 * D:1 * D] + brow(bias_d_ref, base + 0)
        k = qkvo[:, 1 * D:2 * D] + brow(bias_d_ref, base + 1)
        v = qkvo[:, 2 * D:3 * D] + brow(bias_d_ref, base + 2)
        wo = w_all[:, 3 * D:4 * D]                   # (D, D) out-projection

        # block-diagonal Q: head h's sublane block keeps only head-h columns,
        # so ONE matmul against full k^T yields every head's scores stacked
        # along sublanes.
        q_bd = jnp.concatenate([q] * H, axis=0) * hmask           # (H*BS, D)
        s = jax.lax.dot_general(q_bd, k, (((1,), (1,)), ((), ())),
                                preferred_element_type=f32) * scale + abias
        # single softmax chain for all heads
        s = s - jnp.max(s, axis=-1, keepdims=True)
        p = jnp.exp(s)
        p = p * pl.reciprocal(jnp.sum(p, axis=-1, keepdims=True), approx=True)

        # p @ v for all heads at once; head mask keeps only each head's columns
        om = jnp.dot(p, v, preferred_element_type=f32) * hmask    # (H*BS, D)
        attn_pre = om[0:BS]
        for h in range(1, H):                        # sublane-block reduce (VPU)
            attn_pre = attn_pre + om[h * BS:(h + 1) * BS]
        attn = (jnp.dot(attn_pre, wo, preferred_element_type=f32)
                + brow(bias_d_ref, base + 3))

        # post-norm (torch norm_first=False)
        x = _layernorm(x + attn, brow(bias_d_ref, base + 4), brow(bias_d_ref, base + 5))

        # ---- feed-forward ----
        h1 = jnp.maximum(jnp.dot(x, w_ff1_ref[l], preferred_element_type=f32)
                         + brow(bias_f_ref, l), 0.0)
        ff = jnp.dot(h1, w_ff2_ref[l], preferred_element_type=f32) + brow(bias_d_ref, base + 6)
        x = _layernorm(x + ff, brow(bias_d_ref, base + 7), brow(bias_d_ref, base + 8))

    # ---- final encoder LayerNorm ----
    x = _layernorm(x, brow(bias_d_ref, 1), brow(bias_d_ref, 2))

    # ---- MLP head: Linear -> ReLU -> Linear (lane-dense 128-wide output) ----
    h1 = jnp.maximum(jnp.dot(x, w_ff1_ref[L], preferred_element_type=f32)
                     + brow(bias_f_ref, L), 0.0)
    out_ref[...] = (jnp.dot(h1, w_fc2_ref[...], preferred_element_type=f32)
                    + b_fc2_ref[...])


@jax.jit
def transformer_encoder(src, params):
    (pe2, w_emb, w_attn, w_ff1, w_ff2, w_fc2p,
     bias_d, bias_f, b_fc2p, head_mask, attn_bias) = params

    src2 = src.reshape(BS, F)          # collapse batch into rows

    out = pl.pallas_call(
        encoder_kernel,
        out_shape=jax.ShapeDtypeStruct((BS, DOUT_PAD), jnp.float32),
    )(src2, pe2, w_emb, w_attn, w_ff1, w_ff2, w_fc2p,
      bias_d, bias_f, b_fc2p, head_mask, attn_bias)

    return out[:, :DOUT].reshape(B, S, DOUT)


# ---- deterministic parameter construction ----------------------------------
def make_params(key):
    ks = iter(jax.random.split(key, 40))

    def w(shape, scale=0.05):
        return (scale * jax.random.normal(next(ks), shape)).astype(jnp.float32)

    # sinusoidal positional encoding, pre-tiled over batch
    pos = jnp.arange(S, dtype=jnp.float32)[:, None]
    div = jnp.exp(jnp.arange(0, D, 2, dtype=jnp.float32)
                  * (-math.log(10000.0) / D))
    pe = jnp.zeros((S, D), jnp.float32)
    pe = pe.at[:, 0::2].set(jnp.sin(pos * div))
    pe = pe.at[:, 1::2].set(jnp.cos(pos * div))
    pe2 = jnp.tile(pe, (B, 1))                         # (BS, D)

    w_emb = w((F, D))

    # packed attention weight slab: (L, D, 128) = [Wq | Wk | Wv | Wo]
    w_attn = jnp.stack([
        jnp.concatenate([w((D, D)), w((D, D)), w((D, D)), w((D, D))], axis=-1)
        for _ in range(L)
    ])

    # packed (D -> 64) weights: per-layer FFN-1 plus MLP-head fc1
    w_ff1 = jnp.stack([w((D, DFF)) for _ in range(L)] + [w((D, DFC))])
    w_ff2 = jnp.stack([w((DFF, D)) for _ in range(L)])

    w_fc2 = w((DFC, DOUT))
    w_fc2p = jnp.zeros((DFC, DOUT_PAD), jnp.float32).at[:, :DOUT].set(w_fc2)

    # packed D-wide bias / LayerNorm slab
    rows = [w((D,)),                                   # b_emb
            jnp.ones((D,), jnp.float32), jnp.zeros((D,), jnp.float32)]  # final norm
    for _ in range(L):
        rows += [w((D,)), w((D,)), w((D,)),            # b_q, b_k, b_v
                 w((D,)),                              # b_out
                 jnp.ones((D,), jnp.float32), jnp.zeros((D,), jnp.float32),  # ln1
                 w((D,)),                              # b_ff2
                 jnp.ones((D,), jnp.float32), jnp.zeros((D,), jnp.float32)]  # ln2
    bias_d = jnp.stack(rows).astype(jnp.float32)       # (ND_ROWS, D)

    # packed DFF-wide slab: b_ff1 per layer + b_fc1
    bias_f = jnp.stack([w((DFF,)) for _ in range(L)] + [w((DFC,))]).astype(jnp.float32)

    b_fc2 = w((DOUT,))
    b_fc2p = jnp.zeros((1, DOUT_PAD), jnp.float32).at[0, :DOUT].set(b_fc2)

    # static head block-column mask (H*BS, D): row block h keeps head-h columns
    head_of_row = jnp.arange(HBS, dtype=jnp.int32) // BS
    head_of_col = jnp.arange(D, dtype=jnp.int32) // DH
    head_mask = (head_of_row[:, None] == head_of_col[None, :]).astype(jnp.float32)

    # static block-diagonal cross-example additive bias, tiled over heads
    ex = jnp.arange(BS, dtype=jnp.int32) // S
    abias1 = jnp.where(ex[:, None] == ex[None, :], 0.0, NEG).astype(jnp.float32)
    attn_bias = jnp.tile(abias1, (H, 1))               # (H*BS, BS)

    return (pe2, w_emb, w_attn, w_ff1, w_ff2, w_fc2p,
            bias_d, bias_f, b_fc2p, head_mask, attn_bias)


# ---- pure-JAX reference (same math, per-example, per-head) ------------------
def reference(src, params):
    (pe2, w_emb, w_attn, w_ff1, w_ff2, w_fc2p,
     bias_d, bias_f, b_fc2p, head_mask, attn_bias) = params
    pe = pe2[:S]

    def one(x):
        x = x @ w_emb + bias_d[0] + pe
        for l in range(L):
            base = 3 + 9 * l
            wq = w_attn[l][:, 0 * D:1 * D]
            wk = w_attn[l][:, 1 * D:2 * D]
            wv = w_attn[l][:, 2 * D:3 * D]
            wo = w_attn[l][:, 3 * D:4 * D]
            q = x @ wq + bias_d[base + 0]
            k = x @ wk + bias_d[base + 1]
            v = x @ wv + bias_d[base + 2]
            hs = []
            for h in range(H):
                sl = slice(h * DH, (h + 1) * DH)
                s = (q[:, sl] @ k[:, sl].T) / math.sqrt(DH)
                p = jax.nn.softmax(s, axis=-1)
                hs.append(p @ v[:, sl])
            a = jnp.concatenate(hs, -1) @ wo + bias_d[base + 3]
            x = _layernorm(x + a, bias_d[base + 4], bias_d[base + 5])
            ff = jnp.maximum(x @ w_ff1[l] + bias_f[l], 0.0) @ w_ff2[l] + bias_d[base + 6]
            x = _layernorm(x + ff, bias_d[base + 7], bias_d[base + 8])
        x = _layernorm(x, bias_d[1], bias_d[2])
        y = jnp.maximum(x @ w_ff1[L] + bias_f[L], 0.0) @ w_fc2p + b_fc2p[0]
        return y[:, :DOUT]

    return jax.vmap(one)(src)


if __name__ == "__main__":
    key = jax.random.PRNGKey(0)
    k_src, k_par = jax.random.split(key)
    src = jax.random.normal(k_src, (B, S, F), dtype=jnp.float32)
    params = make_params(k_par)

    out = jax.block_until_ready(transformer_encoder(src, params))
    ref = jax.block_until_ready(reference(src, params))

    assert out.shape == (B, S, DOUT), out.shape
    # slightly relaxed tolerance: softmax denom uses the EUP approximate reciprocal
    err = float(jnp.max(jnp.abs(out - ref)))
    assert jnp.allclose(out, ref, rtol=2e-3, atol=2e-3), err

    print("KERNEL_OK")
</pallas_src>

<mosaic_0001>
module attributes {stable_mosaic.version = 11 : i64} {
  func.func @encoder_kernel(%arg0: memref<16x4xf32, #tpu.memory_space<vmem>>, %arg1: memref<16x32xf32, #tpu.memory_space<vmem>>, %arg2: memref<4x32xf32, #tpu.memory_space<vmem>>, %arg3: memref<2x32x128xf32, #tpu.memory_space<vmem>>, %arg4: memref<3x32x64xf32, #tpu.memory_space<vmem>>, %arg5: memref<2x64x32xf32, #tpu.memory_space<vmem>>, %arg6: memref<64x128xf32, #tpu.memory_space<vmem>>, %arg7: memref<21x32xf32, #tpu.memory_space<vmem>>, %arg8: memref<3x64xf32, #tpu.memory_space<vmem>>, %arg9: memref<1x128xf32, #tpu.memory_space<vmem>>, %arg10: memref<64x32xf32, #tpu.memory_space<vmem>>, %arg11: memref<64x16xf32, #tpu.memory_space<vmem>>, %arg12: memref<16x128xf32, #tpu.memory_space<vmem>>) attributes {dimension_semantics = [], scalar_prefetch = 0 : i64, scratch_operands = 0 : i64, tpu.core_type = #tpu.core_type<tc>} {
    %c0 = arith.constant 0 : index
    %c0_0 = arith.constant 0 : index
    %0 = vector.load %arg10[%c0, %c0_0] : memref<64x32xf32, #tpu.memory_space<vmem>>, vector<64x32xf32>
    %c0_1 = arith.constant 0 : index
    %c0_2 = arith.constant 0 : index
    %1 = vector.load %arg11[%c0_1, %c0_2] : memref<64x16xf32, #tpu.memory_space<vmem>>, vector<64x16xf32>
    %c0_3 = arith.constant 0 : index
    %c0_4 = arith.constant 0 : index
    %2 = vector.load %arg0[%c0_3, %c0_4] : memref<16x4xf32, #tpu.memory_space<vmem>>, vector<16x4xf32>
    %c0_5 = arith.constant 0 : index
    %c0_6 = arith.constant 0 : index
    %3 = vector.load %arg2[%c0_5, %c0_6] : memref<4x32xf32, #tpu.memory_space<vmem>>, vector<4x32xf32>
    %cst = arith.constant dense<0.000000e+00> : vector<16x32xf32>
    %4 = tpu.matmul %2, %3, %cst {dimension_numbers = #tpu.dot_dimension_numbers<[1], [0], [0], [1], [0, 0, 1, 1], [], []>} : vector<16x4xf32>, vector<4x32xf32>, vector<16x32xf32> -> vector<16x32xf32>
    %c0_7 = arith.constant 0 : index
    %c0_8 = arith.constant 0 : index
    %5 = vector.load %arg7[%c0_7, %c0_8] : memref<21x32xf32, #tpu.memory_space<vmem>>, vector<1x32xf32>
    %6 = vector.broadcast %5 : vector<1x32xf32> to vector<16x32xf32>
    %7 = arith.addf %4, %6 : vector<16x32xf32>
    %c0_9 = arith.constant 0 : index
    %c0_10 = arith.constant 0 : index
    %8 = vector.load %arg1[%c0_9, %c0_10] : memref<16x32xf32, #tpu.memory_space<vmem>>, vector<16x32xf32>
    %9 = arith.addf %7, %8 : vector<16x32xf32>
    %c0_11 = arith.constant 0 : index
    %c0_12 = arith.constant 0 : index
    %c0_13 = arith.constant 0 : index
    %10 = vector.load %arg3[%c0_11, %c0_12, %c0_13] : memref<2x32x128xf32, #tpu.memory_space<vmem>>, vector<1x32x128xf32>
    %11 = vector.shape_cast %10 : vector<1x32x128xf32> to vector<32x128xf32>
    %cst_14 = arith.constant dense<0.000000e+00> : vector<16x128xf32>
    %12 = tpu.matmul %9, %11, %cst_14 {dimension_numbers = #tpu.dot_dimension_numbers<[1], [0], [0], [1], [0, 0, 1, 1], [], []>} : vector<16x32xf32>, vector<32x128xf32>, vector<16x128xf32> -> vector<16x128xf32>
    %13 = vector.extract_strided_slice %12 {offsets = [0, 0], sizes = [16, 32], strides = [1, 1]} : vector<16x128xf32> to vector<16x32xf32>
    %c3 = arith.constant 3 : index
    %c0_15 = arith.constant 0 : index
    %14 = vector.load %arg7[%c3, %c0_15] : memref<21x32xf32, #tpu.memory_space<vmem>>, vector<1x32xf32>
    %15 = vector.broadcast %14 : vector<1x32xf32> to vector<16x32xf32>
    %16 = arith.addf %13, %15 : vector<16x32xf32>
    %17 = vector.extract_strided_slice %12 {offsets = [0, 32], sizes = [16, 32], strides = [1, 1]} : vector<16x128xf32> to vector<16x32xf32>
    %c4 = arith.constant 4 : index
    %c0_16 = arith.constant 0 : index
    %18 = vector.load %arg7[%c4, %c0_16] : memref<21x32xf32, #tpu.memory_space<vmem>>, vector<1x32xf32>
    %19 = vector.broadcast %18 : vector<1x32xf32> to vector<16x32xf32>
    %20 = arith.addf %17, %19 : vector<16x32xf32>
    %21 = vector.extract_strided_slice %12 {offsets = [0, 64], sizes = [16, 32], strides = [1, 1]} : vector<16x128xf32> to vector<16x32xf32>
    %c5 = arith.constant 5 : index
    %c0_17 = arith.constant 0 : index
    %22 = vector.load %arg7[%c5, %c0_17] : memref<21x32xf32, #tpu.memory_space<vmem>>, vector<1x32xf32>
    %23 = vector.broadcast %22 : vector<1x32xf32> to vector<16x32xf32>
    %24 = arith.addf %21, %23 : vector<16x32xf32>
    %25 = vector.extract_strided_slice %11 {offsets = [0, 96], sizes = [32, 32], strides = [1, 1]} : vector<32x128xf32> to vector<32x32xf32>
    %26 = tpu.concatenate %16, %16, %16, %16 in 0 : vector<16x32xf32>, vector<16x32xf32>, vector<16x32xf32>, vector<16x32xf32> -> vector<64x32xf32>
    %27 = arith.mulf %26, %0 : vector<64x32xf32>
    %cst_18 = arith.constant dense<0.000000e+00> : vector<64x16xf32>
    %28 = tpu.matmul %27, %20, %cst_18 {dimension_numbers = #tpu.dot_dimension_numbers<[1], [1], [0], [0], [0, 0, 1, 0], [], []>} : vector<64x32xf32>, vector<16x32xf32>, vector<64x16xf32> -> vector<64x16xf32>
    %cst_19 = arith.constant 0.353553385 : f32
    %29 = vector.broadcast %cst_19 : f32 to vector<64x16xf32>
    %30 = arith.mulf %28, %29 : vector<64x16xf32>
    %31 = arith.addf %30, %1 : vector<64x16xf32>
    %cst_20 = arith.constant dense<0xFF800000> : vector<64xf32>
    %32 = vector.multi_reduction <maximumf>, %31, %cst_20 [1] : vector<64x16xf32> to vector<64xf32>
    %33 = vector.shape_cast %32 : vector<64xf32> to vector<64x1xf32>
    %34 = vector.broadcast %33 : vector<64x1xf32> to vector<64x16xf32>
    %35 = arith.subf %31, %34 : vector<64x16xf32>
    %36 = math.exp %35 : vector<64x16xf32>
    %cst_21 = arith.constant dense<0.000000e+00> : vector<64xf32>
    %37 = vector.multi_reduction <add>, %36, %cst_21 [1] : vector<64x16xf32> to vector<64xf32>
    %38 = vector.shape_cast %37 : vector<64xf32> to vector<64x1xf32>
    %39 = tpu.reciprocal %38 {approx = true} : vector<64x1xf32> -> vector<64x1xf32>
    %40 = vector.broadcast %39 : vector<64x1xf32> to vector<64x16xf32>
    %41 = arith.mulf %36, %40 : vector<64x16xf32>
    %cst_22 = arith.constant dense<0.000000e+00> : vector<64x32xf32>
    %42 = tpu.matmul %41, %24, %cst_22 {dimension_numbers = #tpu.dot_dimension_numbers<[1], [0], [0], [1], [0, 0, 1, 1], [], []>} : vector<64x16xf32>, vector<16x32xf32>, vector<64x32xf32> -> vector<64x32xf32>
    %43 = arith.mulf %42, %0 : vector<64x32xf32>
    %44 = vector.extract_strided_slice %43 {offsets = [0, 0], sizes = [16, 32], strides = [1, 1]} : vector<64x32xf32> to vector<16x32xf32>
    %45 = vector.extract_strided_slice %43 {offsets = [16, 0], sizes = [16, 32], strides = [1, 1]} : vector<64x32xf32> to vector<16x32xf32>
    %46 = arith.addf %44, %45 : vector<16x32xf32>
    %47 = vector.extract_strided_slice %43 {offsets = [32, 0], sizes = [16, 32], strides = [1, 1]} : vector<64x32xf32> to vector<16x32xf32>
    %48 = arith.addf %46, %47 : vector<16x32xf32>
    %49 = vector.extract_strided_slice %43 {offsets = [48, 0], sizes = [16, 32], strides = [1, 1]} : vector<64x32xf32> to vector<16x32xf32>
    %50 = arith.addf %48, %49 : vector<16x32xf32>
    %cst_23 = arith.constant dense<0.000000e+00> : vector<16x32xf32>
    %51 = tpu.matmul %50, %25, %cst_23 {dimension_numbers = #tpu.dot_dimension_numbers<[1], [0], [0], [1], [0, 0, 1, 1], [], []>} : vector<16x32xf32>, vector<32x32xf32>, vector<16x32xf32> -> vector<16x32xf32>
    %c6 = arith.constant 6 : index
    %c0_24 = arith.constant 0 : index
    %52 = vector.load %arg7[%c6, %c0_24] : memref<21x32xf32, #tpu.memory_space<vmem>>, vector<1x32xf32>
    %53 = vector.broadcast %52 : vector<1x32xf32> to vector<16x32xf32>
    %54 = arith.addf %51, %53 : vector<16x32xf32>
    %55 = arith.addf %9, %54 : vector<16x32xf32>
    %c7 = arith.constant 7 : index
    %c0_25 = arith.constant 0 : index
    %56 = vector.load %arg7[%c7, %c0_25] : memref<21x32xf32, #tpu.memory_space<vmem>>, vector<1x32xf32>
    %c8 = arith.constant 8 : index
    %c0_26 = arith.constant 0 : index
    %57 = vector.load %arg7[%c8, %c0_26] : memref<21x32xf32, #tpu.memory_space<vmem>>, vector<1x32xf32>
    %cst_27 = arith.constant dense<0.000000e+00> : vector<16xf32>
    %58 = vector.multi_reduction <add>, %55, %cst_27 [1] : vector<16x32xf32> to vector<16xf32>
    %59 = vector.shape_cast %58 : vector<16xf32> to vector<16x1xf32>
    %cst_28 = arith.constant 3.200000e+01 : f32
    %60 = vector.broadcast %cst_28 : f32 to vector<16x1xf32>
    %61 = arith.divf %59, %60 : vector<16x1xf32>
    %62 = vector.broadcast %61 : vector<16x1xf32> to vector<16x32xf32>
    %63 = arith.subf %55, %62 : vector<16x32xf32>
    %64 = arith.mulf %63, %63 : vector<16x32xf32>
    %cst_29 = arith.constant dense<0.000000e+00> : vector<16xf32>
    %65 = vector.multi_reduction <add>, %64, %cst_29 [1] : vector<16x32xf32> to vector<16xf32>
    %66 = vector.shape_cast %65 : vector<16xf32> to vector<16x1xf32>
    %cst_30 = arith.constant 3.200000e+01 : f32
    %67 = vector.broadcast %cst_30 : f32 to vector<16x1xf32>
    %68 = arith.divf %66, %67 : vector<16x1xf32>
    %69 = vector.broadcast %61 : vector<16x1xf32> to vector<16x32xf32>
    %70 = arith.subf %55, %69 : vector<16x32xf32>
    %cst_31 = arith.constant 9.99999974E-6 : f32
    %71 = vector.broadcast %cst_31 : f32 to vector<16x1xf32>
    %72 = arith.addf %68, %71 : vector<16x1xf32>
    %73 = math.rsqrt %72 : vector<16x1xf32>
    %74 = vector.broadcast %73 : vector<16x1xf32> to vector<16x32xf32>
    %75 = arith.mulf %70, %74 : vector<16x32xf32>
    %76 = vector.broadcast %56 : vector<1x32xf32> to vector<16x32xf32>
    %77 = arith.mulf %75, %76 : vector<16x32xf32>
    %78 = vector.broadcast %57 : vector<1x32xf32> to vector<16x32xf32>
    %79 = arith.addf %77, %78 : vector<16x32xf32>
    %c0_32 = arith.constant 0 : index
    %c0_33 = arith.constant 0 : index
    %c0_34 = arith.constant 0 : index
    %80 = vector.load %arg4[%c0_32, %c0_33, %c0_34] : memref<3x32x64xf32, #tpu.memory_space<vmem>>, vector<1x32x64xf32>
    %81 = vector.shape_cast %80 : vector<1x32x64xf32> to vector<32x64xf32>
    %cst_35 = arith.constant dense<0.000000e+00> : vector<16x64xf32>
    %82 = tpu.matmul %79, %81, %cst_35 {dimension_numbers = #tpu.dot_dimension_numbers<[1], [0], [0], [1], [0, 0, 1, 1], [], []>} : vector<16x32xf32>, vector<32x64xf32>, vector<16x64xf32> -> vector<16x64xf32>
    %c0_36 = arith.constant 0 : index
    %c0_37 = arith.constant 0 : index
    %83 = vector.load %arg8[%c0_36, %c0_37] : memref<3x64xf32, #tpu.memory_space<vmem>>, vector<1x64xf32>
    %84 = vector.broadcast %83 : vector<1x64xf32> to vector<16x64xf32>
    %85 = arith.addf %82, %84 : vector<16x64xf32>
    %cst_38 = arith.constant 0.000000e+00 : f32
    %86 = vector.broadcast %cst_38 : f32 to vector<16x64xf32>
    %87 = arith.maximumf %85, %86 : vector<16x64xf32>
    %c0_39 = arith.constant 0 : index
    %c0_40 = arith.constant 0 : index
    %c0_41 = arith.constant 0 : index
    %88 = vector.load %arg5[%c0_39, %c0_40, %c0_41] : memref<2x64x32xf32, #tpu.memory_space<vmem>>, vector<1x64x32xf32>
    %89 = vector.shape_cast %88 : vector<1x64x32xf32> to vector<64x32xf32>
    %cst_42 = arith.constant dense<0.000000e+00> : vector<16x32xf32>
    %90 = tpu.matmul %87, %89, %cst_42 {dimension_numbers = #tpu.dot_dimension_numbers<[1], [0], [0], [1], [0, 0, 1, 1], [], []>} : vector<16x64xf32>, vector<64x32xf32>, vector<16x32xf32> -> vector<16x32xf32>
    %c9 = arith.constant 9 : index
    %c0_43 = arith.constant 0 : index
    %91 = vector.load %arg7[%c9, %c0_43] : memref<21x32xf32, #tpu.memory_space<vmem>>, vector<1x32xf32>
    %92 = vector.broadcast %91 : vector<1x32xf32> to vector<16x32xf32>
    %93 = arith.addf %90, %92 : vector<16x32xf32>
    %94 = arith.addf %79, %93 : vector<16x32xf32>
    %c10 = arith.constant 10 : index
    %c0_44 = arith.constant 0 : index
    %95 = vector.load %arg7[%c10, %c0_44] : memref<21x32xf32, #tpu.memory_space<vmem>>, vector<1x32xf32>
    %c11 = arith.constant 11 : index
    %c0_45 = arith.constant 0 : index
    %96 = vector.load %arg7[%c11, %c0_45] : memref<21x32xf32, #tpu.memory_space<vmem>>, vector<1x32xf32>
    %cst_46 = arith.constant dense<0.000000e+00> : vector<16xf32>
    %97 = vector.multi_reduction <add>, %94, %cst_46 [1] : vector<16x32xf32> to vector<16xf32>
    %98 = vector.shape_cast %97 : vector<16xf32> to vector<16x1xf32>
    %cst_47 = arith.constant 3.200000e+01 : f32
    %99 = vector.broadcast %cst_47 : f32 to vector<16x1xf32>
    %100 = arith.divf %98, %99 : vector<16x1xf32>
    %101 = vector.broadcast %100 : vector<16x1xf32> to vector<16x32xf32>
    %102 = arith.subf %94, %101 : vector<16x32xf32>
    %103 = arith.mulf %102, %102 : vector<16x32xf32>
    %cst_48 = arith.constant dense<0.000000e+00> : vector<16xf32>
    %104 = vector.multi_reduction <add>, %103, %cst_48 [1] : vector<16x32xf32> to vector<16xf32>
    %105 = vector.shape_cast %104 : vector<16xf32> to vector<16x1xf32>
    %cst_49 = arith.constant 3.200000e+01 : f32
    %106 = vector.broadcast %cst_49 : f32 to vector<16x1xf32>
    %107 = arith.divf %105, %106 : vector<16x1xf32>
    %108 = vector.broadcast %100 : vector<16x1xf32> to vector<16x32xf32>
    %109 = arith.subf %94, %108 : vector<16x32xf32>
    %cst_50 = arith.constant 9.99999974E-6 : f32
    %110 = vector.broadcast %cst_50 : f32 to vector<16x1xf32>
    %111 = arith.addf %107, %110 : vector<16x1xf32>
    %112 = math.rsqrt %111 : vector<16x1xf32>
    %113 = vector.broadcast %112 : vector<16x1xf32> to vector<16x32xf32>
    %114 = arith.mulf %109, %113 : vector<16x32xf32>
    %115 = vector.broadcast %95 : vector<1x32xf32> to vector<16x32xf32>
    %116 = arith.mulf %114, %115 : vector<16x32xf32>
    %117 = vector.broadcast %96 : vector<1x32xf32> to vector<16x32xf32>
    %118 = arith.addf %116, %117 : vector<16x32xf32>
    %c1 = arith.constant 1 : index
    %c0_51 = arith.constant 0 : index
    %c0_52 = arith.constant 0 : index
    %119 = vector.load %arg3[%c1, %c0_51, %c0_52] : memref<2x32x128xf32, #tpu.memory_space<vmem>>, vector<1x32x128xf32>
    %120 = vector.shape_cast %119 : vector<1x32x128xf32> to vector<32x128xf32>
    %cst_53 = arith.constant dense<0.000000e+00> : vector<16x128xf32>
    %121 = tpu.matmul %118, %120, %cst_53 {dimension_numbers = #tpu.dot_dimension_numbers<[1], [0], [0], [1], [0, 0, 1, 1], [], []>} : vector<16x32xf32>, vector<32x128xf32>, vector<16x128xf32> -> vector<16x128xf32>
    %122 = vector.extract_strided_slice %121 {offsets = [0, 0], sizes = [16, 32], strides = [1, 1]} : vector<16x128xf32> to vector<16x32xf32>
    %c12 = arith.constant 12 : index
    %c0_54 = arith.constant 0 : index
    %123 = vector.load %arg7[%c12, %c0_54] : memref<21x32xf32, #tpu.memory_space<vmem>>, vector<1x32xf32>
    %124 = vector.broadcast %123 : vector<1x32xf32> to vector<16x32xf32>
    %125 = arith.addf %122, %124 : vector<16x32xf32>
    %126 = vector.extract_strided_slice %121 {offsets = [0, 32], sizes = [16, 32], strides = [1, 1]} : vector<16x128xf32> to vector<16x32xf32>
    %c13 = arith.constant 13 : index
    %c0_55 = arith.constant 0 : index
    %127 = vector.load %arg7[%c13, %c0_55] : memref<21x32xf32, #tpu.memory_space<vmem>>, vector<1x32xf32>
    %128 = vector.broadcast %127 : vector<1x32xf32> to vector<16x32xf32>
    %129 = arith.addf %126, %128 : vector<16x32xf32>
    %130 = vector.extract_strided_slice %121 {offsets = [0, 64], sizes = [16, 32], strides = [1, 1]} : vector<16x128xf32> to vector<16x32xf32>
    %c14 = arith.constant 14 : index
    %c0_56 = arith.constant 0 : index
    %131 = vector.load %arg7[%c14, %c0_56] : memref<21x32xf32, #tpu.memory_space<vmem>>, vector<1x32xf32>
    %132 = vector.broadcast %131 : vector<1x32xf32> to vector<16x32xf32>
    %133 = arith.addf %130, %132 : vector<16x32xf32>
    %134 = vector.extract_strided_slice %120 {offsets = [0, 96], sizes = [32, 32], strides = [1, 1]} : vector<32x128xf32> to vector<32x32xf32>
    %135 = tpu.concatenate %125, %125, %125, %125 in 0 : vector<16x32xf32>, vector<16x32xf32>, vector<16x32xf32>, vector<16x32xf32> -> vector<64x32xf32>
    %136 = arith.mulf %135, %0 : vector<64x32xf32>
    %cst_57 = arith.constant dense<0.000000e+00> : vector<64x16xf32>
    %137 = tpu.matmul %136, %129, %cst_57 {dimension_numbers = #tpu.dot_dimension_numbers<[1], [1], [0], [0], [0, 0, 1, 0], [], []>} : vector<64x32xf32>, vector<16x32xf32>, vector<64x16xf32> -> vector<64x16xf32>
    %cst_58 = arith.constant 0.353553385 : f32
    %138 = vector.broadcast %cst_58 : f32 to vector<64x16xf32>
    %139 = arith.mulf %137, %138 : vector<64x16xf32>
    %140 = arith.addf %139, %1 : vector<64x16xf32>
    %cst_59 = arith.constant dense<0xFF800000> : vector<64xf32>
    %141 = vector.multi_reduction <maximumf>, %140, %cst_59 [1] : vector<64x16xf32> to vector<64xf32>
    %142 = vector.shape_cast %141 : vector<64xf32> to vector<64x1xf32>
    %143 = vector.broadcast %142 : vector<64x1xf32> to vector<64x16xf32>
    %144 = arith.subf %140, %143 : vector<64x16xf32>
    %145 = math.exp %144 : vector<64x16xf32>
    %cst_60 = arith.constant dense<0.000000e+00> : vector<64xf32>
    %146 = vector.multi_reduction <add>, %145, %cst_60 [1] : vector<64x16xf32> to vector<64xf32>
    %147 = vector.shape_cast %146 : vector<64xf32> to vector<64x1xf32>
    %148 = tpu.reciprocal %147 {approx = true} : vector<64x1xf32> -> vector<64x1xf32>
    %149 = vector.broadcast %148 : vector<64x1xf32> to vector<64x16xf32>
    %150 = arith.mulf %145, %149 : vector<64x16xf32>
    %cst_61 = arith.constant dense<0.000000e+00> : vector<64x32xf32>
    %151 = tpu.matmul %150, %133, %cst_61 {dimension_numbers = #tpu.dot_dimension_numbers<[1], [0], [0], [1], [0, 0, 1, 1], [], []>} : vector<64x16xf32>, vector<16x32xf32>, vector<64x32xf32> -> vector<64x32xf32>
    %152 = arith.mulf %151, %0 : vector<64x32xf32>
    %153 = vector.extract_strided_slice %152 {offsets = [0, 0], sizes = [16, 32], strides = [1, 1]} : vector<64x32xf32> to vector<16x32xf32>
    %154 = vector.extract_strided_slice %152 {offsets = [16, 0], sizes = [16, 32], strides = [1, 1]} : vector<64x32xf32> to vector<16x32xf32>
    %155 = arith.addf %153, %154 : vector<16x32xf32>
    %156 = vector.extract_strided_slice %152 {offsets = [32, 0], sizes = [16, 32], strides = [1, 1]} : vector<64x32xf32> to vector<16x32xf32>
    %157 = arith.addf %155, %156 : vector<16x32xf32>
    %158 = vector.extract_strided_slice %152 {offsets = [48, 0], sizes = [16, 32], strides = [1, 1]} : vector<64x32xf32> to vector<16x32xf32>
    %159 = arith.addf %157, %158 : vector<16x32xf32>
    %cst_62 = arith.constant dense<0.000000e+00> : vector<16x32xf32>
    %160 = tpu.matmul %159, %134, %cst_62 {dimension_numbers = #tpu.dot_dimension_numbers<[1], [0], [0], [1], [0, 0, 1, 1], [], []>} : vector<16x32xf32>, vector<32x32xf32>, vector<16x32xf32> -> vector<16x32xf32>
    %c15 = arith.constant 15 : index
    %c0_63 = arith.constant 0 : index
    %161 = vector.load %arg7[%c15, %c0_63] : memref<21x32xf32, #tpu.memory_space<vmem>>, vector<1x32xf32>
    %162 = vector.broadcast %161 : vector<1x32xf32> to vector<16x32xf32>
    %163 = arith.addf %160, %162 : vector<16x32xf32>
    %164 = arith.addf %118, %163 : vector<16x32xf32>
    %c16 = arith.constant 16 : index
    %c0_64 = arith.constant 0 : index
    %165 = vector.load %arg7[%c16, %c0_64] : memref<21x32xf32, #tpu.memory_space<vmem>>, vector<1x32xf32>
    %c17 = arith.constant 17 : index
    %c0_65 = arith.constant 0 : index
    %166 = vector.load %arg7[%c17, %c0_65] : memref<21x32xf32, #tpu.memory_space<vmem>>, vector<1x32xf32>
    %cst_66 = arith.constant dense<0.000000e+00> : vector<16xf32>
    %167 = vector.multi_reduction <add>, %164, %cst_66 [1] : vector<16x32xf32> to vector<16xf32>
    %168 = vector.shape_cast %167 : vector<16xf32> to vector<16x1xf32>
    %cst_67 = arith.constant 3.200000e+01 : f32
    %169 = vector.broadcast %cst_67 : f32 to vector<16x1xf32>
    %170 = arith.divf %168, %169 : vector<16x1xf32>
    %171 = vector.broadcast %170 : vector<16x1xf32> to vector<16x32xf32>
    %172 = arith.subf %164, %171 : vector<16x32xf32>
    %173 = arith.mulf %172, %172 : vector<16x32xf32>
    %cst_68 = arith.constant dense<0.000000e+00> : vector<16xf32>
    %174 = vector.multi_reduction <add>, %173, %cst_68 [1] : vector<16x32xf32> to vector<16xf32>
    %175 = vector.shape_cast %174 : vector<16xf32> to vector<16x1xf32>
    %cst_69 = arith.constant 3.200000e+01 : f32
    %176 = vector.broadcast %cst_69 : f32 to vector<16x1xf32>
    %177 = arith.divf %175, %176 : vector<16x1xf32>
    %178 = vector.broadcast %170 : vector<16x1xf32> to vector<16x32xf32>
    %179 = arith.subf %164, %178 : vector<16x32xf32>
    %cst_70 = arith.constant 9.99999974E-6 : f32
    %180 = vector.broadcast %cst_70 : f32 to vector<16x1xf32>
    %181 = arith.addf %177, %180 : vector<16x1xf32>
    %182 = math.rsqrt %181 : vector<16x1xf32>
    %183 = vector.broadcast %182 : vector<16x1xf32> to vector<16x32xf32>
    %184 = arith.mulf %179, %183 : vector<16x32xf32>
    %185 = vector.broadcast %165 : vector<1x32xf32> to vector<16x32xf32>
    %186 = arith.mulf %184, %185 : vector<16x32xf32>
    %187 = vector.broadcast %166 : vector<1x32xf32> to vector<16x32xf32>
    %188 = arith.addf %186, %187 : vector<16x32xf32>
    %c1_71 = arith.constant 1 : index
    %c0_72 = arith.constant 0 : index
    %c0_73 = arith.constant 0 : index
    %189 = vector.load %arg4[%c1_71, %c0_72, %c0_73] : memref<3x32x64xf32, #tpu.memory_space<vmem>>, vector<1x32x64xf32>
    %190 = vector.shape_cast %189 : vector<1x32x64xf32> to vector<32x64xf32>
    %cst_74 = arith.constant dense<0.000000e+00> : vector<16x64xf32>
    %191 = tpu.matmul %188, %190, %cst_74 {dimension_numbers = #tpu.dot_dimension_numbers<[1], [0], [0], [1], [0, 0, 1, 1], [], []>} : vector<16x32xf32>, vector<32x64xf32>, vector<16x64xf32> -> vector<16x64xf32>
    %c1_75 = arith.constant 1 : index
    %c0_76 = arith.constant 0 : index
    %192 = vector.load %arg8[%c1_75, %c0_76] : memref<3x64xf32, #tpu.memory_space<vmem>>, vector<1x64xf32>
    %193 = vector.broadcast %192 : vector<1x64xf32> to vector<16x64xf32>
    %194 = arith.addf %191, %193 : vector<16x64xf32>
    %cst_77 = arith.constant 0.000000e+00 : f32
    %195 = vector.broadcast %cst_77 : f32 to vector<16x64xf32>
    %196 = arith.maximumf %194, %195 : vector<16x64xf32>
    %c1_78 = arith.constant 1 : index
    %c0_79 = arith.constant 0 : index
    %c0_80 = arith.constant 0 : index
    %197 = vector.load %arg5[%c1_78, %c0_79, %c0_80] : memref<2x64x32xf32, #tpu.memory_space<vmem>>, vector<1x64x32xf32>
    %198 = vector.shape_cast %197 : vector<1x64x32xf32> to vector<64x32xf32>
    %cst_81 = arith.constant dense<0.000000e+00> : vector<16x32xf32>
    %199 = tpu.matmul %196, %198, %cst_81 {dimension_numbers = #tpu.dot_dimension_numbers<[1], [0], [0], [1], [0, 0, 1, 1], [], []>} : vector<16x64xf32>, vector<64x32xf32>, vector<16x32xf32> -> vector<16x32xf32>
    %c18 = arith.constant 18 : index
    %c0_82 = arith.constant 0 : index
    %200 = vector.load %arg7[%c18, %c0_82] : memref<21x32xf32, #tpu.memory_space<vmem>>, vector<1x32xf32>
    %201 = vector.broadcast %200 : vector<1x32xf32> to vector<16x32xf32>
    %202 = arith.addf %199, %201 : vector<16x32xf32>
    %203 = arith.addf %188, %202 : vector<16x32xf32>
    %c19 = arith.constant 19 : index
    %c0_83 = arith.constant 0 : index
    %204 = vector.load %arg7[%c19, %c0_83] : memref<21x32xf32, #tpu.memory_space<vmem>>, vector<1x32xf32>
    %c20 = arith.constant 20 : index
    %c0_84 = arith.constant 0 : index
    %205 = vector.load %arg7[%c20, %c0_84] : memref<21x32xf32, #tpu.memory_space<vmem>>, vector<1x32xf32>
    %cst_85 = arith.constant dense<0.000000e+00> : vector<16xf32>
    %206 = vector.multi_reduction <add>, %203, %cst_85 [1] : vector<16x32xf32> to vector<16xf32>
    %207 = vector.shape_cast %206 : vector<16xf32> to vector<16x1xf32>
    %cst_86 = arith.constant 3.200000e+01 : f32
    %208 = vector.broadcast %cst_86 : f32 to vector<16x1xf32>
    %209 = arith.divf %207, %208 : vector<16x1xf32>
    %210 = vector.broadcast %209 : vector<16x1xf32> to vector<16x32xf32>
    %211 = arith.subf %203, %210 : vector<16x32xf32>
    %212 = arith.mulf %211, %211 : vector<16x32xf32>
    %cst_87 = arith.constant dense<0.000000e+00> : vector<16xf32>
    %213 = vector.multi_reduction <add>, %212, %cst_87 [1] : vector<16x32xf32> to vector<16xf32>
    %214 = vector.shape_cast %213 : vector<16xf32> to vector<16x1xf32>
    %cst_88 = arith.constant 3.200000e+01 : f32
    %215 = vector.broadcast %cst_88 : f32 to vector<16x1xf32>
    %216 = arith.divf %214, %215 : vector<16x1xf32>
    %217 = vector.broadcast %209 : vector<16x1xf32> to vector<16x32xf32>
    %218 = arith.subf %203, %217 : vector<16x32xf32>
    %cst_89 = arith.constant 9.99999974E-6 : f32
    %219 = vector.broadcast %cst_89 : f32 to vector<16x1xf32>
    %220 = arith.addf %216, %219 : vector<16x1xf32>
    %221 = math.rsqrt %220 : vector<16x1xf32>
    %222 = vector.broadcast %221 : vector<16x1xf32> to vector<16x32xf32>
    %223 = arith.mulf %218, %222 : vector<16x32xf32>
    %224 = vector.broadcast %204 : vector<1x32xf32> to vector<16x32xf32>
    %225 = arith.mulf %223, %224 : vector<16x32xf32>
    %226 = vector.broadcast %205 : vector<1x32xf32> to vector<16x32xf32>
    %227 = arith.addf %225, %226 : vector<16x32xf32>
    %c1_90 = arith.constant 1 : index
    %c0_91 = arith.constant 0 : index
    %228 = vector.load %arg7[%c1_90, %c0_91] : memref<21x32xf32, #tpu.memory_space<vmem>>, vector<1x32xf32>
    %c2 = arith.constant 2 : index
    %c0_92 = arith.constant 0 : index
    %229 = vector.load %arg7[%c2, %c0_92] : memref<21x32xf32, #tpu.memory_space<vmem>>, vector<1x32xf32>
    %cst_93 = arith.constant dense<0.000000e+00> : vector<16xf32>
    %230 = vector.multi_reduction <add>, %227, %cst_93 [1] : vector<16x32xf32> to vector<16xf32>
    %231 = vector.shape_cast %230 : vector<16xf32> to vector<16x1xf32>
    %cst_94 = arith.constant 3.200000e+01 : f32
    %232 = vector.broadcast %cst_94 : f32 to vector<16x1xf32>
    %233 = arith.divf %231, %232 : vector<16x1xf32>
    %234 = vector.broadcast %233 : vector<16x1xf32> to vector<16x32xf32>
    %235 = arith.subf %227, %234 : vector<16x32xf32>
    %236 = arith.mulf %235, %235 : vector<16x32xf32>
    %cst_95 = arith.constant dense<0.000000e+00> : vector<16xf32>
    %237 = vector.multi_reduction <add>, %236, %cst_95 [1] : vector<16x32xf32> to vector<16xf32>
    %238 = vector.shape_cast %237 : vector<16xf32> to vector<16x1xf32>
    %cst_96 = arith.constant 3.200000e+01 : f32
    %239 = vector.broadcast %cst_96 : f32 to vector<16x1xf32>
    %240 = arith.divf %238, %239 : vector<16x1xf32>
    %241 = vector.broadcast %233 : vector<16x1xf32> to vector<16x32xf32>
    %242 = arith.subf %227, %241 : vector<16x32xf32>
    %cst_97 = arith.constant 9.99999974E-6 : f32
    %243 = vector.broadcast %cst_97 : f32 to vector<16x1xf32>
    %244 = arith.addf %240, %243 : vector<16x1xf32>
    %245 = math.rsqrt %244 : vector<16x1xf32>
    %246 = vector.broadcast %245 : vector<16x1xf32> to vector<16x32xf32>
    %247 = arith.mulf %242, %246 : vector<16x32xf32>
    %248 = vector.broadcast %228 : vector<1x32xf32> to vector<16x32xf32>
    %249 = arith.mulf %247, %248 : vector<16x32xf32>
    %250 = vector.broadcast %229 : vector<1x32xf32> to vector<16x32xf32>
    %251 = arith.addf %249, %250 : vector<16x32xf32>
    %c2_98 = arith.constant 2 : index
    %c0_99 = arith.constant 0 : index
    %c0_100 = arith.constant 0 : index
    %252 = vector.load %arg4[%c2_98, %c0_99, %c0_100] : memref<3x32x64xf32, #tpu.memory_space<vmem>>, vector<1x32x64xf32>
    %253 = vector.shape_cast %252 : vector<1x32x64xf32> to vector<32x64xf32>
    %cst_101 = arith.constant dense<0.000000e+00> : vector<16x64xf32>
    %254 = tpu.matmul %251, %253, %cst_101 {dimension_numbers = #tpu.dot_dimension_numbers<[1], [0], [0], [1], [0, 0, 1, 1], [], []>} : vector<16x32xf32>, vector<32x64xf32>, vector<16x64xf32> -> vector<16x64xf32>
    %c2_102 = arith.constant 2 : index
    %c0_103 = arith.constant 0 : index
    %255 = vector.load %arg8[%c2_102, %c0_103] : memref<3x64xf32, #tpu.memory_space<vmem>>, vector<1x64xf32>
    %256 = vector.broadcast %255 : vector<1x64xf32> to vector<16x64xf32>
    %257 = arith.addf %254, %256 : vector<16x64xf32>
    %cst_104 = arith.constant 0.000000e+00 : f32
    %258 = vector.broadcast %cst_104 : f32 to vector<16x64xf32>
    %259 = arith.maximumf %257, %258 : vector<16x64xf32>
    %c0_105 = arith.constant 0 : index
    %c0_106 = arith.constant 0 : index
    %260 = vector.load %arg6[%c0_105, %c0_106] : memref<64x128xf32, #tpu.memory_space<vmem>>, vector<64x128xf32>
    %cst_107 = arith.constant dense<0.000000e+00> : vector<16x128xf32>
    %261 = tpu.matmul %259, %260, %cst_107 {dimension_numbers = #tpu.dot_dimension_numbers<[1], [0], [0], [1], [0, 0, 1, 1], [], []>} : vector<16x64xf32>, vector<64x128xf32>, vector<16x128xf32> -> vector<16x128xf32>
    %c0_108 = arith.constant 0 : index
    %c0_109 = arith.constant 0 : index
    %262 = vector.load %arg9[%c0_108, %c0_109] : memref<1x128xf32, #tpu.memory_space<vmem>>, vector<1x128xf32>
    %263 = vector.broadcast %262 : vector<1x128xf32> to vector<16x128xf32>
    %264 = arith.addf %261, %263 : vector<16x128xf32>
    %c0_110 = arith.constant 0 : index
    %c0_111 = arith.constant 0 : index
    %265 = vector.load %arg12[%c0_110, %c0_111] : memref<16x128xf32, #tpu.memory_space<vmem>>, vector<16x128xf32>
    tpu.vector_store %arg12[%c0_110, %c0_111], %264 {strides = array<i32>} : memref<16x128xf32, #tpu.memory_space<vmem>>, vector<16x128xf32>,
    return
  }
}

</mosaic_0001>

<llo_original>
// kernel: transformer_encoder.1
$region0: #{transformer_encoder.1}
  #allocation0 [shape = 'u32[]', space=smem, size = 0x4, offset = 0x4, fixed_abs, tag = 'smem constant byte address 0x4 - core index']
  #allocation1 [shape = 'u32[144,128]{1,0:T(1,128)}', space=vmem, size = 0x12000, scoped, tag = 'internal scratch']
  %s0 = inlined_call_operand.vmem [shape: f32[16,4], index: 0, kind: input, shape index: {}]
  %s1 = inlined_call_operand.vmem [shape: f32[16,32], index: 1, kind: input, shape index: {}]
  %s2 = inlined_call_operand.vmem [shape: f32[4,32], index: 2, kind: input, shape index: {}]
  %s3 = inlined_call_operand.vmem [shape: f32[2,32,128], index: 3, kind: input, shape index: {}]
  %s4 = inlined_call_operand.vmem [shape: f32[3,32,64], index: 4, kind: input, shape index: {}]
  %s5 = inlined_call_operand.vmem [shape: f32[2,64,32], index: 5, kind: input, shape index: {}]
  %s6 = inlined_call_operand.vmem [shape: f32[64,128], index: 6, kind: input, shape index: {}]
  %s7 = inlined_call_operand.vmem [shape: f32[21,32], index: 7, kind: input, shape index: {}]
  %s8 = inlined_call_operand.vmem [shape: f32[3,64], index: 8, kind: input, shape index: {}]
  %s9 = inlined_call_operand.vmem [shape: f32[1,128], index: 9, kind: input, shape index: {}]
  %s10 = inlined_call_operand.vmem [shape: f32[64,32], index: 10, kind: input, shape index: {}]
  %s11 = inlined_call_operand.vmem [shape: f32[64,16], index: 11, kind: input, shape index: {}]
  %s12 = inlined_call_operand.vmem [shape: f32[16,128], index: 12, kind: output, shape index: {}]
  %s13 = sld [smem:[#allocation0]]
  $region58: #{transformer_encoder.1} parent=0
    _
  %s15 = ssub.s32 1, %s13
  %s16 = scalar_select 0, %s15, %s13
  // Predicated region
  $region2: #{transformer_encoder.1} parent=0 // pred_check
    _
  $region3: #{transformer_encoder.1} parent=0 // pred_check_branch
    %18 = sbr.rel (0) target = $region5
  $region4: #{transformer_encoder.1} parent=0 // pred_region
    _
  $region5: #{transformer_encoder.1} parent=0 // pred_fallthru
    _
  // Predicated region
  $region6: #{transformer_encoder.1} parent=0 // pred_check
    _
  $region7: #{transformer_encoder.1} parent=0 // pred_check_branch
    %20 = sbr.rel (0) target = $region9
  $region8: #{transformer_encoder.1} parent=0 // pred_region
    _
  $region9: #{transformer_encoder.1} parent=0 // pred_fallthru
    _
  // Predicated region
  $region10: #{transformer_encoder.1} parent=0 // pred_check
    _
  $region11: #{transformer_encoder.1} parent=0 // pred_check_branch
    %22 = sbr.rel (0) target = $region13
  $region12: #{transformer_encoder.1} parent=0 // pred_region
    _
  $region13: #{transformer_encoder.1} parent=0 // pred_fallthru
    _
  // Predicated region
  $region14: #{transformer_encoder.1} parent=0 // pred_check
    _
  $region15: #{transformer_encoder.1} parent=0 // pred_check_branch
    %24 = sbr.rel (0) target = $region17
  $region16: #{transformer_encoder.1} parent=0 // pred_region
    _
  $region17: #{transformer_encoder.1} parent=0 // pred_fallthru
    _
  // Predicated region
  $region18: #{transformer_encoder.1} parent=0 // pred_check
    _
  $region19: #{transformer_encoder.1} parent=0 // pred_check_branch
    %26 = sbr.rel (0) target = $region21
  $region20: #{transformer_encoder.1} parent=0 // pred_region
    _
  $region21: #{transformer_encoder.1} parent=0 // pred_fallthru
    _
  // Predicated region
  $region22: #{transformer_encoder.1} parent=0 // pred_check
    _
  $region23: #{transformer_encoder.1} parent=0 // pred_check_branch
    %28 = sbr.rel (0) target = $region25
  $region24: #{transformer_encoder.1} parent=0 // pred_region
    _
  $region25: #{transformer_encoder.1} parent=0 // pred_fallthru
    _
  // Predicated region
  $region26: #{transformer_encoder.1} parent=0 // pred_check
    _
  $region27: #{transformer_encoder.1} parent=0 // pred_check_branch
    %30 = sbr.rel (0) target = $region29
  $region28: #{transformer_encoder.1} parent=0 // pred_region
    _
  $region29: #{transformer_encoder.1} parent=0 // pred_fallthru
    _
  // Predicated region
  $region30: #{transformer_encoder.1} parent=0 // pred_check
    _
  $region31: #{transformer_encoder.1} parent=0 // pred_check_branch
    %32 = sbr.rel (0) target = $region33
  $region32: #{transformer_encoder.1} parent=0 // pred_region
    _
  $region33: #{transformer_encoder.1} parent=0 // pred_fallthru
    _
  // Predicated region
  $region34: #{transformer_encoder.1} parent=0 // pred_check
    _
  $region35: #{transformer_encoder.1} parent=0 // pred_check_branch
    %34 = sbr.rel (0) target = $region37
  $region36: #{transformer_encoder.1} parent=0 // pred_region
    _
  $region37: #{transformer_encoder.1} parent=0 // pred_fallthru
    _
  // Predicated region
  $region38: #{transformer_encoder.1} parent=0 // pred_check
    _
  $region39: #{transformer_encoder.1} parent=0 // pred_check_branch
    %36 = sbr.rel (0) target = $region41
  $region40: #{transformer_encoder.1} parent=0 // pred_region
    _
  $region41: #{transformer_encoder.1} parent=0 // pred_fallthru
    _
  // Predicated region
  $region42: #{transformer_encoder.1} parent=0 // pred_check
    _
  $region43: #{transformer_encoder.1} parent=0 // pred_check_branch
    %38 = sbr.rel (0) target = $region45
  $region44: #{transformer_encoder.1} parent=0 // pred_region
    _
  $region45: #{transformer_encoder.1} parent=0 // pred_fallthru
    _
  // Predicated region
  $region46: #{transformer_encoder.1} parent=0 // pred_check
    _
  $region47: #{transformer_encoder.1} parent=0 // pred_check_branch
    %40 = sbr.rel (0) target = $region49
  $region48: #{transformer_encoder.1} parent=0 // pred_region
    _
  $region49: #{transformer_encoder.1} parent=0 // pred_fallthru
    _
  %v41 = vld [vmem:[%s10] sm:$0xff]
  %v42 = vld [vmem:[%s10 + $0x8] sm:$0xff]
  %v43 = vld [vmem:[%s10 + $0x10] sm:$0xff]
  %v44 = vld [vmem:[%s10 + $0x18] sm:$0xff]
  %v45 = vld [vmem:[%s10 + $0x20] sm:$0xff]
  %v46 = vld [vmem:[%s10 + $0x28] sm:$0xff]
  %v47 = vld [vmem:[%s10 + $0x30] sm:$0xff]
  %v48 = vld [vmem:[%s10 + $0x38] sm:$0xff]
  %v49 = vld [vmem:[%s11] sm:$0xff]
  %v50 = vld [vmem:[%s11 + $0x8] sm:$0xff]
  %v51 = vld [vmem:[%s11 + $0x10] sm:$0xff]
  %v52 = vld [vmem:[%s11 + $0x18] sm:$0xff]
  %v53 = vld [vmem:[%s11 + $0x20] sm:$0xff]
  %v54 = vld [vmem:[%s11 + $0x28] sm:$0xff]
  %v55 = vld [vmem:[%s11 + $0x30] sm:$0xff]
  %v56 = vld [vmem:[%s11 + $0x38] sm:$0xff]
  %v57 = vld [vmem:[%s0] sm:$0xff]
  %v58 = vld [vmem:[%s0 + $0x8] sm:$0xff]
  %v59 = vld [vmem:[%s2] sm:$0xf]
  %v60 = vld [vmem:[%s7] sm:$0x1]
  %v61 = vlaneseq
  %v62 = vshrl.u32 %v61, 7
  %v63 = vsub.s32 0, %v62
  %v64 = vrot.slane %v60, %v63
  %vm65 = vcmask 31744
  %v67 = vsel %vm65, %v57, 0
  %v70 = vsel %vm65, %v58, 0
  %vm72 = vcmask 1043456
  %v74 = vsel %vm72, %v59, 0
  %76 = vmatprep.subr.mxu0 0.0
  %77 = vmatpush1.msra.mxu0 %v74
  %78 = vmatprep.subr.mxu0 0.0
  %79 = vmatpush1.msra.mxu0 0.0
  %80 = vmatprep.subr.mxu0 0.0
  %81 = vmatpush1.msra.mxu0 0.0
  %82 = vmatprep.subr.mxu0 0.0
  %83 = vmatpush1.msra.mxu0 0.0
  %84 = vmatprep.subr.mxu0 0.0
  %85 = vmatpush1.msra.mxu0 0.0
  %86 = vmatprep.subr.mxu0 0.0
  %87 = vmatpush1.msra.mxu0 0.0
  %88 = vmatprep.subr.mxu0 0.0
  %89 = vmatpush1.msra.mxu0 0.0
  %90 = vmatprep.subr.mxu0 0.0
  %91 = vmatpush1.msra.mxu0 0.0
  %92 = vmatprep.subr.mxu0 0.0
  %93 = vmatpush1.msra.mxu0 0.0
  %94 = vmatprep.subr.mxu0 0.0
  %95 = vmatpush1.msra.mxu0 0.0
  %96 = vmatprep.subr.mxu0 0.0
  %97 = vmatpush1.msra.mxu0 0.0
  %98 = vmatprep.subr.mxu0 0.0
  %99 = vmatpush1.msra.mxu0 0.0
  %100 = vmatprep.subr.mxu0 0.0
  %101 = vmatpush1.msra.mxu0 0.0
  %102 = vmatprep.subr.mxu0 0.0
  %103 = vmatpush1.msra.mxu0 0.0
  %104 = vmatprep.subr.mxu0 0.0
  %105 = vmatpush1.msra.mxu0 0.0
  %106 = vmatprep.subr.mxu0 0.0
  %107 = vmatpush1.msra.mxu0 0.0
  %108 = vmatprep.subr.mxu0 0.0
  %109 = vmatpush1.msra.mxu0 0.0
  %110 = vmatprep.subr.mxu0 0.0
  %111 = vmatpush1.msra.mxu0 0.0
  %112 = vmatprep.subr.mxu0 0.0
  %113 = vmatpush1.msra.mxu0 0.0
  %114 = vmatprep.subr.mxu0 0.0
  %115 = vmatpush1.msra.mxu0 0.0
  %116 = vmatprep.subr.mxu0 0.0
  %117 = vmatpush1.msra.mxu0 0.0
  %118 = vmatprep.subr.mxu0 0.0
  %119 = vmatpush1.msra.mxu0 0.0
  %120 = vmatprep.subr.mxu0 0.0
  %121 = vmatpush1.msra.mxu0 0.0
  %122 = vmatprep.subr.mxu0 0.0
  %123 = vmatpush1.msra.mxu0 0.0
  %124 = vmatprep.subr.mxu0 0.0
  %125 = vmatpush1.msra.mxu0 0.0
  %126 = vmatprep.subr.mxu0 0.0
  %127 = vmatpush1.msra.mxu0 0.0
  %128 = vmatprep.subr.mxu0 0.0
  %129 = vmatpush1.msra.mxu0 0.0
  %130 = vmatprep.subr.mxu0 0.0
  %131 = vmatpush1.msra.mxu0 0.0
  %132 = vmatprep.subr.mxu0 0.0
  %133 = vmatpush1.msra.mxu0 0.0
  %134 = vmatprep.subr.mxu0 0.0
  %135 = vmatpush1.msra.mxu0 0.0
  %136 = vmatprep.subr.mxu0 0.0
  %137 = vmatpush1.msra.mxu0 0.0
  %138 = vmatprep.subr.mxu0 0.0
  %139 = vmatpush1.msra.mxu0 0.0
  %140 = vmatprep.mubr.f32.mxu0 0.0
  %141 = vmatmul.mubr.f32.gmra.mrb[0].mxu0 %v67
  %v142 = vpop.f32.mrb[0].mxu0
  %v143 = vadd.f32 %v64, %v142
  %v144 = vpop.f32.mrb[0].mxu0
  %145 = vmatprep.mubr.f32.mxu0 0.0
  %146 = vmatmul.mubr.f32.gmra.mrb[0].mxu0 %v70
  %v147 = vpop.f32.mrb[0].mxu0
  %v148 = vadd.f32 %v64, %v147
  %v149 = vpop.f32.mrb[0].mxu0
  %150 = vdwg.mxu0
  %v151 = vld [vmem:[%s1] sm:$0xff]
  %v152 = vld [vmem:[%s1 + $0x8] sm:$0xff]
  %v153 = vadd.f32 %v143, %v151
  %v154 = vadd.f32 %v148, %v152
  %v155 = vld [vmem:[%s3] sm:$0xff]
  %v156 = vld [vmem:[%s3 + $0x8] sm:$0xff]
  %v157 = vld [vmem:[%s3 + $0x10] sm:$0xff]
  %v158 = vld [vmem:[%s3 + $0x18] sm:$0xff]
  %vm159 = vcmask 261120
  %v161 = vsel %vm159, %v153, 0
  %v164 = vsel %vm159, %v154, 0
  %166 = vmatprep.subr.mxu0 0.0
  %167 = vmatpush1.msra.mxu0 %v155
  %168 = vmatprep.subr.mxu0 0.0
  %169 = vmatpush1.msra.mxu0 %v156
  %170 = vmatprep.subr.mxu0 0.0
  %171 = vmatpush1.msra.mxu0 %v157
  %172 = vmatprep.subr.mxu0 0.0
  %173 = vmatpush1.msra.mxu0 %v158
  %174 = vmatprep.subr.mxu0 0.0
  %175 = vmatpush1.msra.mxu0 0.0
  %176 = vmatprep.subr.mxu0 0.0
  %177 = vmatpush1.msra.mxu0 0.0
  %178 = vmatprep.subr.mxu0 0.0
  %179 = vmatpush1.msra.mxu0 0.0
  %180 = vmatprep.subr.mxu0 0.0
  %181 = vmatpush1.msra.mxu0 0.0
  %182 = vmatprep.subr.mxu0 0.0
  %183 = vmatpush1.msra.mxu0 0.0
  %184 = vmatprep.subr.mxu0 0.0
  %185 = vmatpush1.msra.mxu0 0.0
  %186 = vmatprep.subr.mxu0 0.0
  %187 = vmatpush1.msra.mxu0 0.0
  %188 = vmatprep.subr.mxu0 0.0
  %189 = vmatpush1.msra.mxu0 0.0
  %190 = vmatprep.subr.mxu0 0.0
  %191 = vmatpush1.msra.mxu0 0.0
  %192 = vmatprep.subr.mxu0 0.0
  %193 = vmatpush1.msra.mxu0 0.0
  %194 = vmatprep.subr.mxu0 0.0
  %195 = vmatpush1.msra.mxu0 0.0
  %196 = vmatprep.subr.mxu0 0.0
  %197 = vmatpush1.msra.mxu0 0.0
  %198 = vmatprep.subr.mxu0 0.0
  %199 = vmatpush1.msra.mxu0 0.0
  %200 = vmatprep.subr.mxu0 0.0
  %201 = vmatpush1.msra.mxu0 0.0
  %202 = vmatprep.subr.mxu0 0.0
  %203 = vmatpush1.msra.mxu0 0.0
  %204 = vmatprep.subr.mxu0 0.0
  %205 = vmatpush1.msra.mxu0 0.0
  %206 = vmatprep.subr.mxu0 0.0
  %207 = vmatpush1.msra.mxu0 0.0
  %208 = vmatprep.subr.mxu0 0.0
  %209 = vmatpush1.msra.mxu0 0.0
  %210 = vmatprep.subr.mxu0 0.0
  %211 = vmatpush1.msra.mxu0 0.0
  %212 = vmatprep.subr.mxu0 0.0
  %213 = vmatpush1.msra.mxu0 0.0
  %214 = vmatprep.subr.mxu0 0.0
  %215 = vmatpush1.msra.mxu0 0.0
  %216 = vmatprep.subr.mxu0 0.0
  %217 = vmatpush1.msra.mxu0 0.0
  %218 = vmatprep.subr.mxu0 0.0
  %219 = vmatpush1.msra.mxu0 0.0
  %220 = vmatprep.subr.mxu0 0.0
  %221 = vmatpush1.msra.mxu0 0.0
  %222 = vmatprep.subr.mxu0 0.0
  %223 = vmatpush1.msra.mxu0 0.0
  %224 = vmatprep.subr.mxu0 0.0
  %225 = vmatpush1.msra.mxu0 0.0
  %226 = vmatprep.subr.mxu0 0.0
  %227 = vmatpush1.msra.mxu0 0.0
  %228 = vmatprep.subr.mxu0 0.0
  %229 = vmatpush1.msra.mxu0 0.0
  %230 = vmatprep.mubr.f32.mxu0 0.0
  %231 = vmatmul.mubr.f32.gmra.mrb[0].mxu0 %v161
  %v232 = vpop.f32.mrb[0].mxu0
  %v233 = vadd.f32 0.0, %v232
  %v234 = vpop.f32.mrb[0].mxu0
  %235 = vmatprep.mubr.f32.mxu0 0.0
  %236 = vmatmul.mubr.f32.gmra.mrb[0].mxu0 %v164
  %v237 = vpop.f32.mrb[0].mxu0
  %v238 = vadd.f32 0.0, %v237
  %v239 = vpop.f32.mrb[0].mxu0
  %240 = vdwg.mxu0
  %v241 = vld [vmem:[%s7 + $0x3] sm:$0x1]
  %v242 = vlaneseq
  %v243 = vshrl.u32 %v242, 7
  %v244 = vsub.s32 0, %v243
  %v245 = vrot.slane %v241, %v244
  %v246 = vadd.f32 %v233, %v245
  %v247 = vadd.f32 %v238, %v245
  %v248 = vld [vmem:[%s7 + $0x4] sm:$0x1]
  %v249 = vlaneseq
  %v250 = vshrl.u32 %v249, 7
  %v251 = vsub.s32 0, %v250
  %v252 = vrot.slane %v248, %v251
  %254 = vrot.lane.b32.xlu0 %v252, 32
  %v255 = vpop.permute.xlu0 %254
  %v257 = vadd.f32 %v233, %v255
  %v258 = vadd.f32 %v238, %v255
  %v259 = vld [vmem:[%s7 + $0x5] sm:$0x1]
  %v260 = vlaneseq
  %v261 = vshrl.u32 %v260, 7
  %v262 = vsub.s32 0, %v261
  %v263 = vrot.slane %v259, %v262
  %265 = vrot.lane.b32.xlu0 %v263, 64
  %v266 = vpop.permute.xlu0 %265
  %v268 = vadd.f32 %v233, %v266
  %v269 = vadd.f32 %v238, %v266
  %v270 = vmul.f32 %v246, %v41
  %v271 = vmul.f32 %v247, %v42
  %v272 = vmul.f32 %v246, %v43
  %v273 = vmul.f32 %v247, %v44
  %v274 = vmul.f32 %v246, %v45
  %v275 = vmul.f32 %v247, %v46
  %v276 = vmul.f32 %v246, %v47
  %v277 = vmul.f32 %v247, %v48
  %280 = vrot.lane.b32.xlu0 %v257, 96
  %v281 = vpop.permute.xlu0 %280
  %282 = vrot.lane.b32.xlu0 %v258, 96
  %v283 = vpop.permute.xlu0 %282
  %v285 = vsel %vm159, %v270, 0
  %v288 = vsel %vm159, %v271, 0
  %v291 = vsel %vm159, %v272, 0
  %v294 = vsel %vm159, %v273, 0
  %v297 = vsel %vm159, %v274, 0
  %v300 = vsel %vm159, %v275, 0
  %v303 = vsel %vm159, %v276, 0
  %v306 = vsel %vm159, %v277, 0
  %v308 = vsel %vm159, %v281, 0
  %v310 = vsel %vm159, %v283, 0
  %312 = vmatprep.subr.mxu0 0.0
  %313 = vmatpush1.xpose.msra.mxu0 %v308
  %314 = vmatprep.subr.mxu0 0.0
  %315 = vmatpush1.xpose.msra.mxu0 %v310
  %316 = vmatprep.subr.mxu0 0.0
  %317 = vmatpush1.xpose.msra.mxu0 0.0
  %318 = vmatprep.subr.mxu0 0.0
  %319 = vmatpush1.xpose.msra.mxu0 0.0
  %320 = vmatprep.subr.mxu0 0.0
  %321 = vmatpush1.xpose.msra.mxu0 0.0
  %322 = vmatprep.subr.mxu0 0.0
  %323 = vmatpush1.xpose.msra.mxu0 0.0
  %324 = vmatprep.subr.mxu0 0.0
  %325 = vmatpush1.xpose.msra.mxu0 0.0
  %326 = vmatprep.subr.mxu0 0.0
  %327 = vmatpush1.xpose.msra.mxu0 0.0
  %328 = vmatprep.subr.mxu0 0.0
  %329 = vmatpush1.xpose.msra.mxu0 0.0
  %330 = vmatprep.subr.mxu0 0.0
  %331 = vmatpush1.xpose.msra.mxu0 0.0
  %332 = vmatprep.subr.mxu0 0.0
  %333 = vmatpush1.xpose.msra.mxu0 0.0
  %334 = vmatprep.subr.mxu0 0.0
  %335 = vmatpush1.xpose.msra.mxu0 0.0
  %336 = vmatprep.subr.mxu0 0.0
  %337 = vmatpush1.xpose.msra.mxu0 0.0
  %338 = vmatprep.subr.mxu0 0.0
  %339 = vmatpush1.xpose.msra.mxu0 0.0
  %340 = vmatprep.subr.mxu0 0.0
  %341 = vmatpush1.xpose.msra.mxu0 0.0
  %342 = vmatprep.subr.mxu0 0.0
  %343 = vmatpush1.xpose.msra.mxu0 0.0
  %344 = vmatprep.subr.mxu0 0.0
  %345 = vmatpush1.xpose.msra.mxu0 0.0
  %346 = vmatprep.subr.mxu0 0.0
  %347 = vmatpush1.xpose.msra.mxu0 0.0
  %348 = vmatprep.subr.mxu0 0.0
  %349 = vmatpush1.xpose.msra.mxu0 0.0
  %350 = vmatprep.subr.mxu0 0.0
  %351 = vmatpush1.xpose.msra.mxu0 0.0
  %352 = vmatprep.subr.mxu0 0.0
  %353 = vmatpush1.xpose.msra.mxu0 0.0
  %354 = vmatprep.subr.mxu0 0.0
  %355 = vmatpush1.xpose.msra.mxu0 0.0
  %356 = vmatprep.subr.mxu0 0.0
  %357 = vmatpush1.xpose.msra.mxu0 0.0
  %358 = vmatprep.subr.mxu0 0.0
  %359 = vmatpush1.xpose.msra.mxu0 0.0
  %360 = vmatprep.subr.mxu0 0.0
  %361 = vmatpush1.xpose.msra.mxu0 0.0
  %362 = vmatprep.subr.mxu0 0.0
  %363 = vmatpush1.xpose.msra.mxu0 0.0
  %364 = vmatprep.subr.mxu0 0.0
  %365 = vmatpush1.xpose.msra.mxu0 0.0
  %366 = vmatprep.subr.mxu0 0.0
  %367 = vmatpush1.xpose.msra.mxu0 0.0
  %368 = vmatprep.subr.mxu0 0.0
  %369 = vmatpush1.xpose.msra.mxu0 0.0
  %370 = vmatprep.subr.mxu0 0.0
  %371 = vmatpush1.xpose.msra.mxu0 0.0
  %372 = vmatprep.subr.mxu0 0.0
  %373 = vmatpush1.xpose.msra.mxu0 0.0
  %374 = vmatprep.subr.mxu0 0.0
  %375 = vmatpush1.xpose.msra.mxu0 0.0
  %376 = vmatprep.mubr.f32.mxu0 0.0
  %377 = vmatmul.mubr.f32.gmra.mrb[0].mxu0 %v285
  %v378 = vpop.f32.mrb[0].mxu0
  %v379 = vadd.f32 0.0, %v378
  %v380 = vpop.f32.mrb[0].mxu0
  %381 = vmatprep.mubr.f32.mxu0 0.0
  %382 = vmatmul.mubr.f32.gmra.mrb[0].mxu0 %v288
  %v383 = vpop.f32.mrb[0].mxu0
  %v384 = vadd.f32 0.0, %v383
  %v385 = vpop.f32.mrb[0].mxu0
  %386 = vmatprep.mubr.f32.mxu0 0.0
  %387 = vmatmul.mubr.f32.gmra.mrb[0].mxu0 %v291
  %v388 = vpop.f32.mrb[0].mxu0
  %v389 = vadd.f32 0.0, %v388
  %v390 = vpop.f32.mrb[0].mxu0
  %391 = vmatprep.mubr.f32.mxu0 0.0
  %392 = vmatmul.mubr.f32.gmra.mrb[0].mxu0 %v294
  %v393 = vpop.f32.mrb[0].mxu0
  %v394 = vadd.f32 0.0, %v393
  %v395 = vpop.f32.mrb[0].mxu0
  %396 = vmatprep.mubr.f32.mxu0 0.0
  %397 = vmatmul.mubr.f32.gmra.mrb[0].mxu0 %v297
  %v398 = vpop.f32.mrb[0].mxu0
  %v399 = vadd.f32 0.0, %v398
  %v400 = vpop.f32.mrb[0].mxu0
  %401 = vmatprep.mubr.f32.mxu0 0.0
  %402 = vmatmul.mubr.f32.gmra.mrb[0].mxu0 %v300
  %v403 = vpop.f32.mrb[0].mxu0
  %v404 = vadd.f32 0.0, %v403
  %v405 = vpop.f32.mrb[0].mxu0
  %406 = vmatprep.mubr.f32.mxu0 0.0
  %407 = vmatmul.mubr.f32.gmra.mrb[0].mxu0 %v303
  %v408 = vpop.f32.mrb[0].mxu0
  %v409 = vadd.f32 0.0, %v408
  %v410 = vpop.f32.mrb[0].mxu0
  %411 = vmatprep.mubr.f32.mxu0 0.0
  %412 = vmatmul.mubr.f32.gmra.mrb[0].mxu0 %v306
  %v413 = vpop.f32.mrb[0].mxu0
  %v414 = vadd.f32 0.0, %v413
  %v415 = vpop.f32.mrb[0].mxu0
  %416 = vdwg.mxu0
  %v417 = vmul.f32 %v379, 0.35355338
  %v418 = vmul.f32 %v384, 0.35355338
  %v419 = vmul.f32 %v389, 0.35355338
  %v420 = vmul.f32 %v394, 0.35355338
  %v421 = vmul.f32 %v399, 0.35355338
  %v422 = vmul.f32 %v404, 0.35355338
  %v423 = vmul.f32 %v409, 0.35355338
  %v424 = vmul.f32 %v414, 0.35355338
  %v425 = vadd.f32 %v417, %v49
  %v426 = vadd.f32 %v418, %v50
  %v427 = vadd.f32 %v419, %v51
  %v428 = vadd.f32 %v420, %v52
  %v429 = vadd.f32 %v421, %v53
  %v430 = vadd.f32 %v422, %v54
  %v431 = vadd.f32 %v423, %v55
  %v432 = vadd.f32 %v424, %v56
  %vm433 = vcmask 130048
  %v434 = vsel %vm433, %v425, -inf
  %435 = vmax.xlane.f32.xlu0 %v434
  %v436 = vpop.xlane.xlu0 %435
  %v437 = vsel %vm433, %v426, -inf
  %438 = vmax.xlane.f32.xlu0 %v437
  %v439 = vpop.xlane.xlu0 %438
  %v440 = vsel %vm433, %v427, -inf
  %441 = vmax.xlane.f32.xlu0 %v440
  %v442 = vpop.xlane.xlu0 %441
  %v443 = vsel %vm433, %v428, -inf
  %444 = vmax.xlane.f32.xlu0 %v443
  %v445 = vpop.xlane.xlu0 %444
  %v446 = vsel %vm433, %v429, -inf
  %447 = vmax.xlane.f32.xlu0 %v446
  %v448 = vpop.xlane.xlu0 %447
  %v449 = vsel %vm433, %v430, -inf
  %450 = vmax.xlane.f32.xlu0 %v449
  %v451 = vpop.xlane.xlu0 %450
  %v452 = vsel %vm433, %v431, -inf
  %453 = vmax.xlane.f32.xlu0 %v452
  %v454 = vpop.xlane.xlu0 %453
  %v455 = vsel %vm433, %v432, -inf
  %456 = vmax.xlane.f32.xlu0 %v455
  %v457 = vpop.xlane.xlu0 %456
  %v458 = vsub.f32 %v425, %v436
  %v459 = vsub.f32 %v426, %v439
  %v460 = vsub.f32 %v427, %v442
  %v461 = vsub.f32 %v428, %v445
  %v462 = vsub.f32 %v429, %v448
  %v463 = vsub.f32 %v430, %v451
  %v464 = vsub.f32 %v431, %v454
  %v465 = vsub.f32 %v432, %v457
  %v466 = vmul.f32 %v458, 1.442695
  %v467 = vpow.pop %v466
  %v468 = vmul.f32 %v459, 1.442695
  %v469 = vpow.pop %v468
  %v470 = vmul.f32 %v460, 1.442695
  %v471 = vpow.pop %v470
  %v472 = vmul.f32 %v461, 1.442695
  %v473 = vpow.pop %v472
  %v474 = vmul.f32 %v462, 1.442695
  %v475 = vpow.pop %v474
  %v476 = vmul.f32 %v463, 1.442695
  %v477 = vpow.pop %v476
  %v478 = vmul.f32 %v464, 1.442695
  %v479 = vpow.pop %v478
  %v480 = vmul.f32 %v465, 1.442695
  %v481 = vpow.pop %v480
  %v482 = vsel %vm433, %v467, 0.0
  %483 = vadd.xlane.f32.xlu0 %v482
  %v484 = vpop.xlane.xlu0 %483
  %v485 = vsel %vm433, %v469, 0.0
  %486 = vadd.xlane.f32.xlu0 %v485
  %v487 = vpop.xlane.xlu0 %486
  %v488 = vsel %vm433, %v471, 0.0
  %489 = vadd.xlane.f32.xlu0 %v488
  %v490 = vpop.xlane.xlu0 %489
  %v491 = vsel %vm433, %v473, 0.0
  %492 = vadd.xlane.f32.xlu0 %v491
  %v493 = vpop.xlane.xlu0 %492
  %v494 = vsel %vm433, %v475, 0.0
  %495 = vadd.xlane.f32.xlu0 %v494
  %v496 = vpop.xlane.xlu0 %495
  %v497 = vsel %vm433, %v477, 0.0
  %498 = vadd.xlane.f32.xlu0 %v497
  %v499 = vpop.xlane.xlu0 %498
  %v500 = vsel %vm433, %v479, 0.0
  %501 = vadd.xlane.f32.xlu0 %v500
  %v502 = vpop.xlane.xlu0 %501
  %v503 = vsel %vm433, %v481, 0.0
  %504 = vadd.xlane.f32.xlu0 %v503
  %v505 = vpop.xlane.xlu0 %504
  %v506 = vrcp.pop %v484
  %v507 = vrcp.pop %v487
  %v508 = vrcp.pop %v490
  %v509 = vrcp.pop %v493
  %v510 = vrcp.pop %v496
  %v511 = vrcp.pop %v499
  %v512 = vrcp.pop %v502
  %v513 = vrcp.pop %v505
  %v514 = vmul.f32 %v467, %v506
  %v515 = vmul.f32 %v469, %v507
  %v516 = vmul.f32 %v471, %v508
  %v517 = vmul.f32 %v473, %v509
  %v518 = vmul.f32 %v475, %v510
  %v519 = vmul.f32 %v477, %v511
  %v520 = vmul.f32 %v479, %v512
  %v521 = vmul.f32 %v481, %v513
  %524 = vrot.lane.b32.xlu0 %v268, 64
  %v525 = vpop.permute.xlu0 %524
  %526 = vrot.lane.b32.xlu0 %v269, 64
  %v527 = vpop.permute.xlu0 %526
  %v531 = vsel %vm433, %v514, 0
  %v534 = vsel %vm433, %v515, 0
  %v537 = vsel %vm433, %v516, 0
  %v540 = vsel %vm433, %v517, 0
  %v543 = vsel %vm433, %v518, 0
  %v546 = vsel %vm433, %v519, 0
  %v549 = vsel %vm433, %v520, 0
  %v552 = vsel %vm433, %v521, 0
  %554 = vmatprep.subr.mxu0 0.0
  %555 = vmatpush1.msra.mxu0 %v525
  %556 = vmatprep.subr.mxu0 0.0
  %557 = vmatpush1.msra.mxu0 %v527
  %558 = vmatprep.subr.mxu0 0.0
  %559 = vmatpush1.msra.mxu0 0.0
  %560 = vmatprep.subr.mxu0 0.0
  %561 = vmatpush1.msra.mxu0 0.0
  %562 = vmatprep.subr.mxu0 0.0
  %563 = vmatpush1.msra.mxu0 0.0
  %564 = vmatprep.subr.mxu0 0.0
  %565 = vmatpush1.msra.mxu0 0.0
  %566 = vmatprep.subr.mxu0 0.0
  %567 = vmatpush1.msra.mxu0 0.0
  %568 = vmatprep.subr.mxu0 0.0
  %569 = vmatpush1.msra.mxu0 0.0
  %570 = vmatprep.subr.mxu0 0.0
  %571 = vmatpush1.msra.mxu0 0.0
  %572 = vmatprep.subr.mxu0 0.0
  %573 = vmatpush1.msra.mxu0 0.0
  %574 = vmatprep.subr.mxu0 0.0
  %575 = vmatpush1.msra.mxu0 0.0
  %576 = vmatprep.subr.mxu0 0.0
  %577 = vmatpush1.msra.mxu0 0.0
  %578 = vmatprep.subr.mxu0 0.0
  %579 = vmatpush1.msra.mxu0 0.0
  %580 = vmatprep.subr.mxu0 0.0
  %581 = vmatpush1.msra.mxu0 0.0
  %582 = vmatprep.subr.mxu0 0.0
  %583 = vmatpush1.msra.mxu0 0.0
  %584 = vmatprep.subr.mxu0 0.0
  %585 = vmatpush1.msra.mxu0 0.0
  %586 = vmatprep.subr.mxu0 0.0
  %587 = vmatpush1.msra.mxu0 0.0
  %588 = vmatprep.subr.mxu0 0.0
  %589 = vmatpush1.msra.mxu0 0.0
  %590 = vmatprep.subr.mxu0 0.0
  %591 = vmatpush1.msra.mxu0 0.0
  %592 = vmatprep.subr.mxu0 0.0
  %593 = vmatpush1.msra.mxu0 0.0
  %594 = vmatprep.subr.mxu0 0.0
  %595 = vmatpush1.msra.mxu0 0.0
  %596 = vmatprep.subr.mxu0 0.0
  %597 = vmatpush1.msra.mxu0 0.0
  %598 = vmatprep.subr.mxu0 0.0
  %599 = vmatpush1.msra.mxu0 0.0
  %600 = vmatprep.subr.mxu0 0.0
  %601 = vmatpush1.msra.mxu0 0.0
  %602 = vmatprep.subr.mxu0 0.0
  %603 = vmatpush1.msra.mxu0 0.0
  %604 = vmatprep.subr.mxu0 0.0
  %605 = vmatpush1.msra.mxu0 0.0
  %606 = vmatprep.subr.mxu0 0.0
  %607 = vmatpush1.msra.mxu0 0.0
  %608 = vmatprep.subr.mxu0 0.0
  %609 = vmatpush1.msra.mxu0 0.0
  %610 = vmatprep.subr.mxu0 0.0
  %611 = vmatpush1.msra.mxu0 0.0
  %612 = vmatprep.subr.mxu0 0.0
  %613 = vmatpush1.msra.mxu0 0.0
  %614 = vmatprep.subr.mxu0 0.0
  %615 = vmatpush1.msra.mxu0 0.0
  %616 = vmatprep.subr.mxu0 0.0
  %617 = vmatpush1.msra.mxu0 0.0
  %618 = vmatprep.mubr.f32.mxu0 0.0
  %619 = vmatmul.mubr.f32.gmra.mrb[0].mxu0 %v531
  %v620 = vpop.f32.mrb[0].mxu0
  %v621 = vadd.f32 0.0, %v620
  %v622 = vpop.f32.mrb[0].mxu0
  %623 = vmatprep.mubr.f32.mxu0 0.0
  %624 = vmatmul.mubr.f32.gmra.mrb[0].mxu0 %v534
  %v625 = vpop.f32.mrb[0].mxu0
  %v626 = vadd.f32 0.0, %v625
  %v627 = vpop.f32.mrb[0].mxu0
  %628 = vmatprep.mubr.f32.mxu0 0.0
  %629 = vmatmul.mubr.f32.gmra.mrb[0].mxu0 %v537
  %v630 = vpop.f32.mrb[0].mxu0
  %v631 = vadd.f32 0.0, %v630
  %v632 = vpop.f32.mrb[0].mxu0
  %633 = vmatprep.mubr.f32.mxu0 0.0
  %634 = vmatmul.mubr.f32.gmra.mrb[0].mxu0 %v540
  %v635 = vpop.f32.mrb[0].mxu0
  %v636 = vadd.f32 0.0, %v635
  %v637 = vpop.f32.mrb[0].mxu0
  %638 = vmatprep.mubr.f32.mxu0 0.0
  %639 = vmatmul.mubr.f32.gmra.mrb[0].mxu0 %v543
  %v640 = vpop.f32.mrb[0].mxu0
  %v641 = vadd.f32 0.0, %v640
  %v642 = vpop.f32.mrb[0].mxu0
  %643 = vmatprep.mubr.f32.mxu0 0.0
  %644 = vmatmul.mubr.f32.gmra.mrb[0].mxu0 %v546
  %v645 = vpop.f32.mrb[0].mxu0
  %v646 = vadd.f32 0.0, %v645
  %v647 = vpop.f32.mrb[0].mxu0
  %648 = vmatprep.mubr.f32.mxu0 0.0
  %649 = vmatmul.mubr.f32.gmra.mrb[0].mxu0 %v549
  %v650 = vpop.f32.mrb[0].mxu0
  %v651 = vadd.f32 0.0, %v650
  %v652 = vpop.f32.mrb[0].mxu0
  %653 = vmatprep.mubr.f32.mxu0 0.0
  %654 = vmatmul.mubr.f32.gmra.mrb[0].mxu0 %v552
  %v655 = vpop.f32.mrb[0].mxu0
  %v656 = vadd.f32 0.0, %v655
  %v657 = vpop.f32.mrb[0].mxu0
  %658 = vdwg.mxu0
  %v659 = vmul.f32 %v621, %v41
  %v660 = vmul.f32 %v626, %v42
  %v661 = vmul.f32 %v631, %v43
  %v662 = vmul.f32 %v636, %v44
  %v663 = vmul.f32 %v641, %v45
  %v664 = vmul.f32 %v646, %v46
  %v665 = vmul.f32 %v651, %v47
  %v666 = vmul.f32 %v656, %v48
  %v667 = vadd.f32 %v659, %v661
  %v668 = vadd.f32 %v660, %v662
  %v669 = vadd.f32 %v667, %v663
  %v670 = vadd.f32 %v668, %v664
  %v671 = vadd.f32 %v669, %v665
  %v672 = vadd.f32 %v670, %v666
  %v673 = vld [vmem:[%s7 + $0x6] sm:$0x1]
  %v674 = vlaneseq
  %v675 = vshrl.u32 %v674, 7
  %v676 = vsub.s32 0, %v675
  %v677 = vrot.slane %v673, %v676
  %682 = vrot.lane.b32.xlu0 %v155, 32
  %v683 = vpop.permute.xlu0 %682
  %684 = vrot.lane.b32.xlu0 %v156, 32
  %v685 = vpop.permute.xlu0 %684
  %686 = vrot.lane.b32.xlu0 %v157, 32
  %v687 = vpop.permute.xlu0 %686
  %688 = vrot.lane.b32.xlu0 %v158, 32
  %v689 = vpop.permute.xlu0 %688
  %v695 = vsel %vm159, %v671, 0
  %v698 = vsel %vm159, %v672, 0
  %700 = vmatprep.subr.mxu0 0.0
  %701 = vmatpush1.msra.mxu0 %v683
  %702 = vmatprep.subr.mxu0 0.0
  %703 = vmatpush1.msra.mxu0 %v685
  %704 = vmatprep.subr.mxu0 0.0
  %705 = vmatpush1.msra.mxu0 %v687
  %706 = vmatprep.subr.mxu0 0.0
  %707 = vmatpush1.msra.mxu0 %v689
  %708 = vmatprep.subr.mxu0 0.0
  %709 = vmatpush1.msra.mxu0 0.0
  %710 = vmatprep.subr.mxu0 0.0
  %711 = vmatpush1.msra.mxu0 0.0
  %712 = vmatprep.subr.mxu0 0.0
  %713 = vmatpush1.msra.mxu0 0.0
  %714 = vmatprep.subr.mxu0 0.0
  %715 = vmatpush1.msra.mxu0 0.0
  %716 = vmatprep.subr.mxu0 0.0
  %717 = vmatpush1.msra.mxu0 0.0
  %718 = vmatprep.subr.mxu0 0.0
  %719 = vmatpush1.msra.mxu0 0.0
  %720 = vmatprep.subr.mxu0 0.0
  %721 = vmatpush1.msra.mxu0 0.0
  %722 = vmatprep.subr.mxu0 0.0
  %723 = vmatpush1.msra.mxu0 0.0
  %724 = vmatprep.subr.mxu0 0.0
  %725 = vmatpush1.msra.mxu0 0.0
  %726 = vmatprep.subr.mxu0 0.0
  %727 = vmatpush1.msra.mxu0 0.0
  %728 = vmatprep.subr.mxu0 0.0
  %729 = vmatpush1.msra.mxu0 0.0
  %730 = vmatprep.subr.mxu0 0.0
  %731 = vmatpush1.msra.mxu0 0.0
  %732 = vmatprep.subr.mxu0 0.0
  %733 = vmatpush1.msra.mxu0 0.0
  %734 = vmatprep.subr.mxu0 0.0
  %735 = vmatpush1.msra.mxu0 0.0
  %736 = vmatprep.subr.mxu0 0.0
  %737 = vmatpush1.msra.mxu0 0.0
  %738 = vmatprep.subr.mxu0 0.0
  %739 = vmatpush1.msra.mxu0 0.0
  %740 = vmatprep.subr.mxu0 0.0
  %741 = vmatpush1.msra.mxu0 0.0
  %742 = vmatprep.subr.mxu0 0.0
  %743 = vmatpush1.msra.mxu0 0.0
  %744 = vmatprep.subr.mxu0 0.0
  %745 = vmatpush1.msra.mxu0 0.0
  %746 = vmatprep.subr.mxu0 0.0
  %747 = vmatpush1.msra.mxu0 0.0
  %748 = vmatprep.subr.mxu0 0.0
  %749 = vmatpush1.msra.mxu0 0.0
  %750 = vmatprep.subr.mxu0 0.0
  %751 = vmatpush1.msra.mxu0 0.0
  %752 = vmatprep.subr.mxu0 0.0
  %753 = vmatpush1.msra.mxu0 0.0
  %754 = vmatprep.subr.mxu0 0.0
  %755 = vmatpush1.msra.mxu0 0.0
  %756 = vmatprep.subr.mxu0 0.0
  %757 = vmatpush1.msra.mxu0 0.0
  %758 = vmatprep.subr.mxu0 0.0
  %759 = vmatpush1.msra.mxu0 0.0
  %760 = vmatprep.subr.mxu0 0.0
  %761 = vmatpush1.msra.mxu0 0.0
  %762 = vmatprep.subr.mxu0 0.0
  %763 = vmatpush1.msra.mxu0 0.0
  %764 = vmatprep.mubr.f32.mxu0 0.0
  %765 = vmatmul.mubr.f32.gmra.mrb[0].mxu0 %v695
  %v766 = vpop.f32.mrb[0].mxu0
  %v767 = vadd.f32 %v677, %v766
  %v768 = vpop.f32.mrb[0].mxu0
  %769 = vmatprep.mubr.f32.mxu0 0.0
  %770 = vmatmul.mubr.f32.gmra.mrb[0].mxu0 %v698
  %v771 = vpop.f32.mrb[0].mxu0
  %v772 = vadd.f32 %v677, %v771
  %v773 = vpop.f32.mrb[0].mxu0
  %774 = vdwg.mxu0
  %v775 = vadd.f32 %v153, %v767
  %v776 = vadd.f32 %v154, %v772
  %v777 = vld [vmem:[%s7 + $0x7] sm:$0x1]
  %v778 = vld [vmem:[%s7 + $0x8] sm:$0x1]
  %v779 = vsel %vm159, %v775, 0.0
  %780 = vadd.xlane.f32.xlu0 %v779
  %v781 = vpop.xlane.xlu0 %780
  %v782 = vsel %vm159, %v776, 0.0
  %783 = vadd.xlane.f32.xlu0 %v782
  %v784 = vpop.xlane.xlu0 %783
  %v785 = vrcp.pop 32.0
  %v786 = vmul.f32 %v781, %v785
  %v787 = vmul.f32 %v784, %v785
  %v788 = vsub.f32 %v775, %v786
  %v789 = vsub.f32 %v776, %v787
  %v790 = vmul.f32 %v788, %v788
  %v791 = vmul.f32 %v789, %v789
  %v792 = vsel %vm159, %v790, 0.0
  %793 = vadd.xlane.f32.xlu0 %v792
  %v794 = vpop.xlane.xlu0 %793
  %v795 = vsel %vm159, %v791, 0.0
  %796 = vadd.xlane.f32.xlu0 %v795
  %v797 = vpop.xlane.xlu0 %796
  %v798 = vmul.f32 %v794, %v785
  %v799 = vmul.f32 %v797, %v785
  %v800 = vadd.f32 %v798, 1e-05
  %v801 = vadd.f32 %v799, 1e-05
  %v802 = vrsqrt.pop %v800
  %v803 = vrsqrt.pop %v801
  %v804 = vmul.f32 %v788, %v802
  %v805 = vmul.f32 %v789, %v803
  %v806 = vlaneseq
  %v807 = vshrl.u32 %v806, 7
  %v808 = vsub.s32 0, %v807
  %v809 = vrot.slane %v777, %v808
  %v810 = vmul.f32 %v804, %v809
  %v811 = vmul.f32 %v805, %v809
  %v812 = vlaneseq
  %v813 = vshrl.u32 %v812, 7
  %v814 = vsub.s32 0, %v813
  %v815 = vrot.slane %v778, %v814
  %v816 = vadd.f32 %v810, %v815
  %v817 = vadd.f32 %v811, %v815
  %v818 = vld [vmem:[%s4] sm:$0xff]
  %v819 = vld [vmem:[%s4 + $0x8] sm:$0xff]
  %v820 = vld [vmem:[%s4 + $0x10] sm:$0xff]
  %v821 = vld [vmem:[%s4 + $0x18] sm:$0xff]
  %v822 = vld [vmem:[%s8] sm:$0x1]
  %v823 = vlaneseq
  %v824 = vshrl.u32 %v823, 7
  %v825 = vsub.s32 0, %v824
  %v826 = vrot.slane %v822, %v825
  %v828 = vsel %vm159, %v816, 0
  %v831 = vsel %vm159, %v817, 0
  %833 = vmatprep.subr.mxu0 0.0
  %834 = vmatpush1.msra.mxu0 %v818
  %835 = vmatprep.subr.mxu0 0.0
  %836 = vmatpush1.msra.mxu0 %v819
  %837 = vmatprep.subr.mxu0 0.0
  %838 = vmatpush1.msra.mxu0 %v820
  %839 = vmatprep.subr.mxu0 0.0
  %840 = vmatpush1.msra.mxu0 %v821
  %841 = vmatprep.subr.mxu0 0.0
  %842 = vmatpush1.msra.mxu0 0.0
  %843 = vmatprep.subr.mxu0 0.0
  %844 = vmatpush1.msra.mxu0 0.0
  %845 = vmatprep.subr.mxu0 0.0
  %846 = vmatpush1.msra.mxu0 0.0
  %847 = vmatprep.subr.mxu0 0.0
  %848 = vmatpush1.msra.mxu0 0.0
  %849 = vmatprep.subr.mxu0 0.0
  %850 = vmatpush1.msra.mxu0 0.0
  %851 = vmatprep.subr.mxu0 0.0
  %852 = vmatpush1.msra.mxu0 0.0
  %853 = vmatprep.subr.mxu0 0.0
  %854 = vmatpush1.msra.mxu0 0.0
  %855 = vmatprep.subr.mxu0 0.0
  %856 = vmatpush1.msra.mxu0 0.0
  %857 = vmatprep.subr.mxu0 0.0
  %858 = vmatpush1.msra.mxu0 0.0
  %859 = vmatprep.subr.mxu0 0.0
  %860 = vmatpush1.msra.mxu0 0.0
  %861 = vmatprep.subr.mxu0 0.0
  %862 = vmatpush1.msra.mxu0 0.0
  %863 = vmatprep.subr.mxu0 0.0
  %864 = vmatpush1.msra.mxu0 0.0
  %865 = vmatprep.subr.mxu0 0.0
  %866 = vmatpush1.msra.mxu0 0.0
  %867 = vmatprep.subr.mxu0 0.0
  %868 = vmatpush1.msra.mxu0 0.0
  %869 = vmatprep.subr.mxu0 0.0
  %870 = vmatpush1.msra.mxu0 0.0
  %871 = vmatprep.subr.mxu0 0.0
  %872 = vmatpush1.msra.mxu0 0.0
  %873 = vmatprep.subr.mxu0 0.0
  %874 = vmatpush1.msra.mxu0 0.0
  %875 = vmatprep.subr.mxu0 0.0
  %876 = vmatpush1.msra.mxu0 0.0
  %877 = vmatprep.subr.mxu0 0.0
  %878 = vmatpush1.msra.mxu0 0.0
  %879 = vmatprep.subr.mxu0 0.0
  %880 = vmatpush1.msra.mxu0 0.0
  %881 = vmatprep.subr.mxu0 0.0
  %882 = vmatpush1.msra.mxu0 0.0
  %883 = vmatprep.subr.mxu0 0.0
  %884 = vmatpush1.msra.mxu0 0.0
  %885 = vmatprep.subr.mxu0 0.0
  %886 = vmatpush1.msra.mxu0 0.0
  %887 = vmatprep.subr.mxu0 0.0
  %888 = vmatpush1.msra.mxu0 0.0
  %889 = vmatprep.subr.mxu0 0.0
  %890 = vmatpush1.msra.mxu0 0.0
  %891 = vmatprep.subr.mxu0 0.0
  %892 = vmatpush1.msra.mxu0 0.0
  %893 = vmatprep.subr.mxu0 0.0
  %894 = vmatpush1.msra.mxu0 0.0
  %895 = vmatprep.subr.mxu0 0.0
  %896 = vmatpush1.msra.mxu0 0.0
  %897 = vmatprep.mubr.f32.mxu0 0.0
  %898 = vmatmul.mubr.f32.gmra.mrb[0].mxu0 %v828
  %v899 = vpop.f32.mrb[0].mxu0
  %v900 = vadd.f32 %v826, %v899
  %v901 = vpop.f32.mrb[0].mxu0
  %902 = vmatprep.mubr.f32.mxu0 0.0
  %903 = vmatmul.mubr.f32.gmra.mrb[0].mxu0 %v831
  %v904 = vpop.f32.mrb[0].mxu0
  %v905 = vadd.f32 %v826, %v904
  %v906 = vpop.f32.mrb[0].mxu0
  %907 = vdwg.mxu0
  %v908 = vmax.f32 %v900, 0.0
  %v909 = vmax.f32 %v905, 0.0
  %v910 = vld [vmem:[%s5] sm:$0xff]
  %v911 = vld [vmem:[%s5 + $0x8] sm:$0xff]
  %v912 = vld [vmem:[%s5 + $0x10] sm:$0xff]
  %v913 = vld [vmem:[%s5 + $0x18] sm:$0xff]
  %v914 = vld [vmem:[%s5 + $0x20] sm:$0xff]
  %v915 = vld [vmem:[%s5 + $0x28] sm:$0xff]
  %v916 = vld [vmem:[%s5 + $0x30] sm:$0xff]
  %v917 = vld [vmem:[%s5 + $0x38] sm:$0xff]
  %v918 = vld [vmem:[%s7 + $0x9] sm:$0x1]
  %v919 = vlaneseq
  %v920 = vshrl.u32 %v919, 7
  %v921 = vsub.s32 0, %v920
  %v922 = vrot.slane %v918, %v921
  %vm923 = vcmask 523264
  %v925 = vsel %vm923, %v908, 0
  %v928 = vsel %vm923, %v909, 0
  %930 = vmatprep.subr.mxu0 0.0
  %931 = vmatpush1.msra.mxu0 %v910
  %932 = vmatprep.subr.mxu0 0.0
  %933 = vmatpush1.msra.mxu0 %v911
  %934 = vmatprep.subr.mxu0 0.0
  %935 = vmatpush1.msra.mxu0 %v912
  %936 = vmatprep.subr.mxu0 0.0
  %937 = vmatpush1.msra.mxu0 %v913
  %938 = vmatprep.subr.mxu0 0.0
  %939 = vmatpush1.msra.mxu0 %v914
  %940 = vmatprep.subr.mxu0 0.0
  %941 = vmatpush1.msra.mxu0 %v915
  %942 = vmatprep.subr.mxu0 0.0
  %943 = vmatpush1.msra.mxu0 %v916
  %944 = vmatprep.subr.mxu0 0.0
  %945 = vmatpush1.msra.mxu0 %v917
  %946 = vmatprep.subr.mxu0 0.0
  %947 = vmatpush1.msra.mxu0 0.0
  %948 = vmatprep.subr.mxu0 0.0
  %949 = vmatpush1.msra.mxu0 0.0
  %950 = vmatprep.subr.mxu0 0.0
  %951 = vmatpush1.msra.mxu0 0.0
  %952 = vmatprep.subr.mxu0 0.0
  %953 = vmatpush1.msra.mxu0 0.0
  %954 = vmatprep.subr.mxu0 0.0
  %955 = vmatpush1.msra.mxu0 0.0
  %956 = vmatprep.subr.mxu0 0.0
  %957 = vmatpush1.msra.mxu0 0.0
  %958 = vmatprep.subr.mxu0 0.0
  %959 = vmatpush1.msra.mxu0 0.0
  %960 = vmatprep.subr.mxu0 0.0
  %961 = vmatpush1.msra.mxu0 0.0
  %962 = vmatprep.subr.mxu0 0.0
  %963 = vmatpush1.msra.mxu0 0.0
  %964 = vmatprep.subr.mxu0 0.0
  %965 = vmatpush1.msra.mxu0 0.0
  %966 = vmatprep.subr.mxu0 0.0
  %967 = vmatpush1.msra.mxu0 0.0
  %968 = vmatprep.subr.mxu0 0.0
  %969 = vmatpush1.msra.mxu0 0.0
  %970 = vmatprep.subr.mxu0 0.0
  %971 = vmatpush1.msra.mxu0 0.0
  %972 = vmatprep.subr.mxu0 0.0
  %973 = vmatpush1.msra.mxu0 0.0
  %974 = vmatprep.subr.mxu0 0.0
  %975 = vmatpush1.msra.mxu0 0.0
  %976 = vmatprep.subr.mxu0 0.0
  %977 = vmatpush1.msra.mxu0 0.0
  %978 = vmatprep.subr.mxu0 0.0
  %979 = vmatpush1.msra.mxu0 0.0
  %980 = vmatprep.subr.mxu0 0.0
  %981 = vmatpush1.msra.mxu0 0.0
  %982 = vmatprep.subr.mxu0 0.0
  %983 = vmatpush1.msra.mxu0 0.0
  %984 = vmatprep.subr.mxu0 0.0
  %985 = vmatpush1.msra.mxu0 0.0
  %986 = vmatprep.subr.mxu0 0.0
  %987 = vmatpush1.msra.mxu0 0.0
  %988 = vmatprep.subr.mxu0 0.0
  %989 = vmatpush1.msra.mxu0 0.0
  %990 = vmatprep.subr.mxu0 0.0
  %991 = vmatpush1.msra.mxu0 0.0
  %992 = vmatprep.subr.mxu0 0.0
  %993 = vmatpush1.msra.mxu0 0.0
  %994 = vmatprep.mubr.f32.mxu0 0.0
  %995 = vmatmul.mubr.f32.gmra.mrb[0].mxu0 %v925
  %v996 = vpop.f32.mrb[0].mxu0
  %v997 = vadd.f32 %v922, %v996
  %v998 = vpop.f32.mrb[0].mxu0
  %999 = vmatprep.mubr.f32.mxu0 0.0
  %1000 = vmatmul.mubr.f32.gmra.mrb[0].mxu0 %v928
  %v1001 = vpop.f32.mrb[0].mxu0
  %v1002 = vadd.f32 %v922, %v1001
  %v1003 = vpop.f32.mrb[0].mxu0
  %1004 = vdwg.mxu0
  %v1005 = vadd.f32 %v816, %v997
  %v1006 = vadd.f32 %v817, %v1002
  %v1007 = vld [vmem:[%s7 + $0xa] sm:$0x1]
  %v1008 = vld [vmem:[%s7 + $0xb] sm:$0x1]
  %v1009 = vsel %vm159, %v1005, 0.0
  %1010 = vadd.xlane.f32.xlu0 %v1009
  %v1011 = vpop.xlane.xlu0 %1010
  %v1012 = vsel %vm159, %v1006, 0.0
  %1013 = vadd.xlane.f32.xlu0 %v1012
  %v1014 = vpop.xlane.xlu0 %1013
  %v1015 = vmul.f32 %v1011, %v785
  %v1016 = vmul.f32 %v1014, %v785
  %v1017 = vsub.f32 %v1005, %v1015
  %v1018 = vsub.f32 %v1006, %v1016
  %v1019 = vmul.f32 %v1017, %v1017
  %v1020 = vmul.f32 %v1018, %v1018
  %v1021 = vsel %vm159, %v1019, 0.0
  %1022 = vadd.xlane.f32.xlu0 %v1021
  %v1023 = vpop.xlane.xlu0 %1022
  %v1024 = vsel %vm159, %v1020, 0.0
  %1025 = vadd.xlane.f32.xlu0 %v1024
  %v1026 = vpop.xlane.xlu0 %1025
  %v1027 = vmul.f32 %v1023, %v785
  %v1028 = vmul.f32 %v1026, %v785
  %v1029 = vadd.f32 %v1027, 1e-05
  %v1030 = vadd.f32 %v1028, 1e-05
  %v1031 = vrsqrt.pop %v1029
  %v1032 = vrsqrt.pop %v1030
  %v1033 = vmul.f32 %v1017, %v1031
  %v1034 = vmul.f32 %v1018, %v1032
  %v1035 = vlaneseq
  %v1036 = vshrl.u32 %v1035, 7
  %v1037 = vsub.s32 0, %v1036
  %v1038 = vrot.slane %v1007, %v1037
  %v1039 = vmul.f32 %v1033, %v1038
  %v1040 = vmul.f32 %v1034, %v1038
  %v1041 = vlaneseq
  %v1042 = vshrl.u32 %v1041, 7
  %v1043 = vsub.s32 0, %v1042
  %v1044 = vrot.slane %v1008, %v1043
  %v1045 = vadd.f32 %v1039, %v1044
  %v1046 = vadd.f32 %v1040, %v1044
  %s1047 = scalar_lea.vmem %s3, 32
  %v1048 = vld [vmem:[%s1047] sm:$0xff]
  %v1049 = vld [vmem:[%s1047 + $0x8] sm:$0xff]
  %v1050 = vld [vmem:[%s1047 + $0x10] sm:$0xff]
  %v1051 = vld [vmem:[%s1047 + $0x18] sm:$0xff]
  %v1053 = vsel %vm159, %v1045, 0
  %v1056 = vsel %vm159, %v1046, 0
  %1058 = vmatprep.subr.mxu0 0.0
  %1059 = vmatpush1.msra.mxu0 %v1048
  %1060 = vmatprep.subr.mxu0 0.0
  %1061 = vmatpush1.msra.mxu0 %v1049
  %1062 = vmatprep.subr.mxu0 0.0
  %1063 = vmatpush1.msra.mxu0 %v1050
  %1064 = vmatprep.subr.mxu0 0.0
  %1065 = vmatpush1.msra.mxu0 %v1051
  %1066 = vmatprep.subr.mxu0 0.0
  %1067 = vmatpush1.msra.mxu0 0.0
  %1068 = vmatprep.subr.mxu0 0.0
  %1069 = vmatpush1.msra.mxu0 0.0
  %1070 = vmatprep.subr.mxu0 0.0
  %1071 = vmatpush1.msra.mxu0 0.0
  %1072 = vmatprep.subr.mxu0 0.0
  %1073 = vmatpush1.msra.mxu0 0.0
  %1074 = vmatprep.subr.mxu0 0.0
  %1075 = vmatpush1.msra.mxu0 0.0
  %1076 = vmatprep.subr.mxu0 0.0
  %1077 = vmatpush1.msra.mxu0 0.0
  %1078 = vmatprep.subr.mxu0 0.0
  %1079 = vmatpush1.msra.mxu0 0.0
  %1080 = vmatprep.subr.mxu0 0.0
  %1081 = vmatpush1.msra.mxu0 0.0
  %1082 = vmatprep.subr.mxu0 0.0
  %1083 = vmatpush1.msra.mxu0 0.0
  %1084 = vmatprep.subr.mxu0 0.0
  %1085 = vmatpush1.msra.mxu0 0.0
  %1086 = vmatprep.subr.mxu0 0.0
  %1087 = vmatpush1.msra.mxu0 0.0
  %1088 = vmatprep.subr.mxu0 0.0
  %1089 = vmatpush1.msra.mxu0 0.0
  %1090 = vmatprep.subr.mxu0 0.0
  %1091 = vmatpush1.msra.mxu0 0.0
  %1092 = vmatprep.subr.mxu0 0.0
  %1093 = vmatpush1.msra.mxu0 0.0
  %1094 = vmatprep.subr.mxu0 0.0
  %1095 = vmatpush1.msra.mxu0 0.0
  %1096 = vmatprep.subr.mxu0 0.0
  %1097 = vmatpush1.msra.mxu0 0.0
  %1098 = vmatprep.subr.mxu0 0.0
  %1099 = vmatpush1.msra.mxu0 0.0
  %1100 = vmatprep.subr.mxu0 0.0
  %1101 = vmatpush1.msra.mxu0 0.0
  %1102 = vmatprep.subr.mxu0 0.0
  %1103 = vmatpush1.msra.mxu0 0.0
  %1104 = vmatprep.subr.mxu0 0.0
  %1105 = vmatpush1.msra.mxu0 0.0
  %1106 = vmatprep.subr.mxu0 0.0
  %1107 = vmatpush1.msra.mxu0 0.0
  %1108 = vmatprep.subr.mxu0 0.0
  %1109 = vmatpush1.msra.mxu0 0.0
  %1110 = vmatprep.subr.mxu0 0.0
  %1111 = vmatpush1.msra.mxu0 0.0
  %1112 = vmatprep.subr.mxu0 0.0
  %1113 = vmatpush1.msra.mxu0 0.0
  %1114 = vmatprep.subr.mxu0 0.0
  %1115 = vmatpush1.msra.mxu0 0.0
  %1116 = vmatprep.subr.mxu0 0.0
  %1117 = vmatpush1.msra.mxu0 0.0
  %1118 = vmatprep.subr.mxu0 0.0
  %1119 = vmatpush1.msra.mxu0 0.0
  %1120 = vmatprep.subr.mxu0 0.0
  %1121 = vmatpush1.msra.mxu0 0.0
  %1122 = vmatprep.mubr.f32.mxu0 0.0
  %1123 = vmatmul.mubr.f32.gmra.mrb[0].mxu0 %v1053
  %v1124 = vpop.f32.mrb[0].mxu0
  %v1125 = vadd.f32 0.0, %v1124
  %v1126 = vpop.f32.mrb[0].mxu0
  %1127 = vmatprep.mubr.f32.mxu0 0.0
  %1128 = vmatmul.mubr.f32.gmra.mrb[0].mxu0 %v1056
  %v1129 = vpop.f32.mrb[0].mxu0
  %v1130 = vadd.f32 0.0, %v1129
  %v1131 = vpop.f32.mrb[0].mxu0
  %1132 = vdwg.mxu0
  %v1133 = vld [vmem:[%s7 + $0xc] sm:$0x1]
  %v1134 = vlaneseq
  %v1135 = vshrl.u32 %v1134, 7
  %v1136 = vsub.s32 0, %v1135
  %v1137 = vrot.slane %v1133, %v1136
  %v1138 = vadd.f32 %v1125, %v1137
  %v1139 = vadd.f32 %v1130, %v1137
  %v1140 = vld [vmem:[%s7 + $0xd] sm:$0x1]
  %v1141 = vlaneseq
  %v1142 = vshrl.u32 %v1141, 7
  %v1143 = vsub.s32 0, %v1142
  %v1144 = vrot.slane %v1140, %v1143
  %1146 = vrot.lane.b32.xlu0 %v1144, 32
  %v1147 = vpop.permute.xlu0 %1146
  %v1149 = vadd.f32 %v1125, %v1147
  %v1150 = vadd.f32 %v1130, %v1147
  %v1151 = vld [vmem:[%s7 + $0xe] sm:$0x1]
  %v1152 = vlaneseq
  %v1153 = vshrl.u32 %v1152, 7
  %v1154 = vsub.s32 0, %v1153
  %v1155 = vrot.slane %v1151, %v1154
  %1157 = vrot.lane.b32.xlu0 %v1155, 64
  %v1158 = vpop.permute.xlu0 %1157
  %v1160 = vadd.f32 %v1125, %v1158
  %v1161 = vadd.f32 %v1130, %v1158
  %v1162 = vmul.f32 %v1138, %v41
  %v1163 = vmul.f32 %v1139, %v42
  %v1164 = vmul.f32 %v1138, %v43
  %v1165 = vmul.f32 %v1139, %v44
  %v1166 = vmul.f32 %v1138, %v45
  %v1167 = vmul.f32 %v1139, %v46
  %v1168 = vmul.f32 %v1138, %v47
  %v1169 = vmul.f32 %v1139, %v48
  %1172 = vrot.lane.b32.xlu0 %v1149, 96
  %v1173 = vpop.permute.xlu0 %1172
  %1174 = vrot.lane.b32.xlu0 %v1150, 96
  %v1175 = vpop.permute.xlu0 %1174
  %v1177 = vsel %vm159, %v1162, 0
  %v1180 = vsel %vm159, %v1163, 0
  %v1183 = vsel %vm159, %v1164, 0
  %v1186 = vsel %vm159, %v1165, 0
  %v1189 = vsel %vm159, %v1166, 0
  %v1192 = vsel %vm159, %v1167, 0
  %v1195 = vsel %vm159, %v1168, 0
  %v1198 = vsel %vm159, %v1169, 0
  %v1200 = vsel %vm159, %v1173, 0
  %v1202 = vsel %vm159, %v1175, 0
  %1204 = vmatprep.subr.mxu0 0.0
  %1205 = vmatpush1.xpose.msra.mxu0 %v1200
  %1206 = vmatprep.subr.mxu0 0.0
  %1207 = vmatpush1.xpose.msra.mxu0 %v1202
  %1208 = vmatprep.subr.mxu0 0.0
  %1209 = vmatpush1.xpose.msra.mxu0 0.0
  %1210 = vmatprep.subr.mxu0 0.0
  %1211 = vmatpush1.xpose.msra.mxu0 0.0
  %1212 = vmatprep.subr.mxu0 0.0
  %1213 = vmatpush1.xpose.msra.mxu0 0.0
  %1214 = vmatprep.subr.mxu0 0.0
  %1215 = vmatpush1.xpose.msra.mxu0 0.0
  %1216 = vmatprep.subr.mxu0 0.0
  %1217 = vmatpush1.xpose.msra.mxu0 0.0
  %1218 = vmatprep.subr.mxu0 0.0
  %1219 = vmatpush1.xpose.msra.mxu0 0.0
  %1220 = vmatprep.subr.mxu0 0.0
  %1221 = vmatpush1.xpose.msra.mxu0 0.0
  %1222 = vmatprep.subr.mxu0 0.0
  %1223 = vmatpush1.xpose.msra.mxu0 0.0
  %1224 = vmatprep.subr.mxu0 0.0
  %1225 = vmatpush1.xpose.msra.mxu0 0.0
  %1226 = vmatprep.subr.mxu0 0.0
  %1227 = vmatpush1.xpose.msra.mxu0 0.0
  %1228 = vmatprep.subr.mxu0 0.0
  %1229 = vmatpush1.xpose.msra.mxu0 0.0
  %1230 = vmatprep.subr.mxu0 0.0
  %1231 = vmatpush1.xpose.msra.mxu0 0.0
  %1232 = vmatprep.subr.mxu0 0.0
  %1233 = vmatpush1.xpose.msra.mxu0 0.0
  %1234 = vmatprep.subr.mxu0 0.0
  %1235 = vmatpush1.xpose.msra.mxu0 0.0
  %1236 = vmatprep.subr.mxu0 0.0
  %1237 = vmatpush1.xpose.msra.mxu0 0.0
  %1238 = vmatprep.subr.mxu0 0.0
  %1239 = vmatpush1.xpose.msra.mxu0 0.0
  %1240 = vmatprep.subr.mxu0 0.0
  %1241 = vmatpush1.xpose.msra.mxu0 0.0
  %1242 = vmatprep.subr.mxu0 0.0
  %1243 = vmatpush1.xpose.msra.mxu0 0.0
  %1244 = vmatprep.subr.mxu0 0.0
  %1245 = vmatpush1.xpose.msra.mxu0 0.0
  %1246 = vmatprep.subr.mxu0 0.0
  %1247 = vmatpush1.xpose.msra.mxu0 0.0
  %1248 = vmatprep.subr.mxu0 0.0
  %1249 = vmatpush1.xpose.msra.mxu0 0.0
  %1250 = vmatprep.subr.mxu0 0.0
  %1251 = vmatpush1.xpose.msra.mxu0 0.0
  %1252 = vmatprep.subr.mxu0 0.0
  %1253 = vmatpush1.xpose.msra.mxu0 0.0
  %1254 = vmatprep.subr.mxu0 0.0
  %1255 = vmatpush1.xpose.msra.mxu0 0.0
  %1256 = vmatprep.subr.mxu0 0.0
  %1257 = vmatpush1.xpose.msra.mxu0 0.0
  %1258 = vmatprep.subr.mxu0 0.0
  %1259 = vmatpush1.xpose.msra.mxu0 0.0
  %1260 = vmatprep.subr.mxu0 0.0
  %1261 = vmatpush1.xpose.msra.mxu0 0.0
  %1262 = vmatprep.subr.mxu0 0.0
  %1263 = vmatpush1.xpose.msra.mxu0 0.0
  %1264 = vmatprep.subr.mxu0 0.0
  %1265 = vmatpush1.xpose.msra.mxu0 0.0
  %1266 = vmatprep.subr.mxu0 0.0
  %1267 = vmatpush1.xpose.msra.mxu0 0.0
  %1268 = vmatprep.mubr.f32.mxu0 0.0
  %1269 = vmatmul.mubr.f32.gmra.mrb[0].mxu0 %v1177
  %v1270 = vpop.f32.mrb[0].mxu0
  %v1271 = vadd.f32 0.0, %v1270
  %v1272 = vpop.f32.mrb[0].mxu0
  %1273 = vmatprep.mubr.f32.mxu0 0.0
  %1274 = vmatmul.mubr.f32.gmra.mrb[0].mxu0 %v1180
  %v1275 = vpop.f32.mrb[0].mxu0
  %v1276 = vadd.f32 0.0, %v1275
  %v1277 = vpop.f32.mrb[0].mxu0
  %1278 = vmatprep.mubr.f32.mxu0 0.0
  %1279 = vmatmul.mubr.f32.gmra.mrb[0].mxu0 %v1183
  %v1280 = vpop.f32.mrb[0].mxu0
  %v1281 = vadd.f32 0.0, %v1280
  %v1282 = vpop.f32.mrb[0].mxu0
  %1283 = vmatprep.mubr.f32.mxu0 0.0
  %1284 = vmatmul.mubr.f32.gmra.mrb[0].mxu0 %v1186
  %v1285 = vpop.f32.mrb[0].mxu0
  %v1286 = vadd.f32 0.0, %v1285
  %v1287 = vpop.f32.mrb[0].mxu0
  %1288 = vmatprep.mubr.f32.mxu0 0.0
  %1289 = vmatmul.mubr.f32.gmra.mrb[0].mxu0 %v1189
  %v1290 = vpop.f32.mrb[0].mxu0
  %v1291 = vadd.f32 0.0, %v1290
  %v1292 = vpop.f32.mrb[0].mxu0
  %1293 = vmatprep.mubr.f32.mxu0 0.0
  %1294 = vmatmul.mubr.f32.gmra.mrb[0].mxu0 %v1192
  %v1295 = vpop.f32.mrb[0].mxu0
  %v1296 = vadd.f32 0.0, %v1295
  %v1297 = vpop.f32.mrb[0].mxu0
  %1298 = vmatprep.mubr.f32.mxu0 0.0
  %1299 = vmatmul.mubr.f32.gmra.mrb[0].mxu0 %v1195
  %v1300 = vpop.f32.mrb[0].mxu0
  %v1301 = vadd.f32 0.0, %v1300
  %v1302 = vpop.f32.mrb[0].mxu0
  %1303 = vmatprep.mubr.f32.mxu0 0.0
  %1304 = vmatmul.mubr.f32.gmra.mrb[0].mxu0 %v1198
  %v1305 = vpop.f32.mrb[0].mxu0
  %v1306 = vadd.f32 0.0, %v1305
  %v1307 = vpop.f32.mrb[0].mxu0
  %1308 = vdwg.mxu0
  %v1309 = vmul.f32 %v1271, 0.35355338
  %v1310 = vmul.f32 %v1276, 0.35355338
  %v1311 = vmul.f32 %v1281, 0.35355338
  %v1312 = vmul.f32 %v1286, 0.35355338
  %v1313 = vmul.f32 %v1291, 0.35355338
  %v1314 = vmul.f32 %v1296, 0.35355338
  %v1315 = vmul.f32 %v1301, 0.35355338
  %v1316 = vmul.f32 %v1306, 0.35355338
  %v1317 = vadd.f32 %v1309, %v49
  %v1318 = vadd.f32 %v1310, %v50
  %v1319 = vadd.f32 %v1311, %v51
  %v1320 = vadd.f32 %v1312, %v52
  %v1321 = vadd.f32 %v1313, %v53
  %v1322 = vadd.f32 %v1314, %v54
  %v1323 = vadd.f32 %v1315, %v55
  %v1324 = vadd.f32 %v1316, %v56
  %v1325 = vsel %vm433, %v1317, -inf
  %1326 = vmax.xlane.f32.xlu0 %v1325
  %v1327 = vpop.xlane.xlu0 %1326
  %v1328 = vsel %vm433, %v1318, -inf
  %1329 = vmax.xlane.f32.xlu0 %v1328
  %v1330 = vpop.xlane.xlu0 %1329
  %v1331 = vsel %vm433, %v1319, -inf
  %1332 = vmax.xlane.f32.xlu0 %v1331
  %v1333 = vpop.xlane.xlu0 %1332
  %v1334 = vsel %vm433, %v1320, -inf
  %1335 = vmax.xlane.f32.xlu0 %v1334
  %v1336 = vpop.xlane.xlu0 %1335
  %v1337 = vsel %vm433, %v1321, -inf
  %1338 = vmax.xlane.f32.xlu0 %v1337
  %v1339 = vpop.xlane.xlu0 %1338
  %v1340 = vsel %vm433, %v1322, -inf
  %1341 = vmax.xlane.f32.xlu0 %v1340
  %v1342 = vpop.xlane.xlu0 %1341
  %v1343 = vsel %vm433, %v1323, -inf
  %1344 = vmax.xlane.f32.xlu0 %v1343
  %v1345 = vpop.xlane.xlu0 %1344
  %v1346 = vsel %vm433, %v1324, -inf
  %1347 = vmax.xlane.f32.xlu0 %v1346
  %v1348 = vpop.xlane.xlu0 %1347
  %v1349 = vsub.f32 %v1317, %v1327
  %v1350 = vsub.f32 %v1318, %v1330
  %v1351 = vsub.f32 %v1319, %v1333
  %v1352 = vsub.f32 %v1320, %v1336
  %v1353 = vsub.f32 %v1321, %v1339
  %v1354 = vsub.f32 %v1322, %v1342
  %v1355 = vsub.f32 %v1323, %v1345
  %v1356 = vsub.f32 %v1324, %v1348
  %v1357 = vmul.f32 %v1349, 1.442695
  %v1358 = vpow.pop %v1357
  %v1359 = vmul.f32 %v1350, 1.442695
  %v1360 = vpow.pop %v1359
  %v1361 = vmul.f32 %v1351, 1.442695
  %v1362 = vpow.pop %v1361
  %v1363 = vmul.f32 %v1352, 1.442695
  %v1364 = vpow.pop %v1363
  %v1365 = vmul.f32 %v1353, 1.442695
  %v1366 = vpow.pop %v1365
  %v1367 = vmul.f32 %v1354, 1.442695
  %v1368 = vpow.pop %v1367
  %v1369 = vmul.f32 %v1355, 1.442695
  %v1370 = vpow.pop %v1369
  %v1371 = vmul.f32 %v1356, 1.442695
  %v1372 = vpow.pop %v1371
  %v1373 = vsel %vm433, %v1358, 0.0
  %1374 = vadd.xlane.f32.xlu0 %v1373
  %v1375 = vpop.xlane.xlu0 %1374
  %v1376 = vsel %vm433, %v1360, 0.0
  %1377 = vadd.xlane.f32.xlu0 %v1376
  %v1378 = vpop.xlane.xlu0 %1377
  %v1379 = vsel %vm433, %v1362, 0.0
  %1380 = vadd.xlane.f32.xlu0 %v1379
  %v1381 = vpop.xlane.xlu0 %1380
  %v1382 = vsel %vm433, %v1364, 0.0
  %1383 = vadd.xlane.f32.xlu0 %v1382
  %v1384 = vpop.xlane.xlu0 %1383
  %v1385 = vsel %vm433, %v1366, 0.0
  %1386 = vadd.xlane.f32.xlu0 %v1385
  %v1387 = vpop.xlane.xlu0 %1386
  %v1388 = vsel %vm433, %v1368, 0.0
  %1389 = vadd.xlane.f32.xlu0 %v1388
  %v1390 = vpop.xlane.xlu0 %1389
  %v1391 = vsel %vm433, %v1370, 0.0
  %1392 = vadd.xlane.f32.xlu0 %v1391
  %v1393 = vpop.xlane.xlu0 %1392
  %v1394 = vsel %vm433, %v1372, 0.0
  %1395 = vadd.xlane.f32.xlu0 %v1394
  %v1396 = vpop.xlane.xlu0 %1395
  %v1397 = vrcp.pop %v1375
  %v1398 = vrcp.pop %v1378
  %v1399 = vrcp.pop %v1381
  %v1400 = vrcp.pop %v1384
  %v1401 = vrcp.pop %v1387
  %v1402 = vrcp.pop %v1390
  %v1403 = vrcp.pop %v1393
  %v1404 = vrcp.pop %v1396
  %v1405 = vmul.f32 %v1358, %v1397
  %v1406 = vmul.f32 %v1360, %v1398
  %v1407 = vmul.f32 %v1362, %v1399
  %v1408 = vmul.f32 %v1364, %v1400
  %v1409 = vmul.f32 %v1366, %v1401
  %v1410 = vmul.f32 %v1368, %v1402
  %v1411 = vmul.f32 %v1370, %v1403
  %v1412 = vmul.f32 %v1372, %v1404
  %1415 = vrot.lane.b32.xlu0 %v1160, 64
  %v1416 = vpop.permute.xlu0 %1415
  %1417 = vrot.lane.b32.xlu0 %v1161, 64
  %v1418 = vpop.permute.xlu0 %1417
  %v1422 = vsel %vm433, %v1405, 0
  %v1425 = vsel %vm433, %v1406, 0
  %v1428 = vsel %vm433, %v1407, 0
  %v1431 = vsel %vm433, %v1408, 0
  %v1434 = vsel %vm433, %v1409, 0
  %v1437 = vsel %vm433, %v1410, 0
  %v1440 = vsel %vm433, %v1411, 0
  %v1443 = vsel %vm433, %v1412, 0
  %1445 = vmatprep.subr.mxu0 0.0
  %1446 = vmatpush1.msra.mxu0 %v1416
  %1447 = vmatprep.subr.mxu0 0.0
  %1448 = vmatpush1.msra.mxu0 %v1418
  %1449 = vmatprep.subr.mxu0 0.0
  %1450 = vmatpush1.msra.mxu0 0.0
  %1451 = vmatprep.subr.mxu0 0.0
  %1452 = vmatpush1.msra.mxu0 0.0
  %1453 = vmatprep.subr.mxu0 0.0
  %1454 = vmatpush1.msra.mxu0 0.0
  %1455 = vmatprep.subr.mxu0 0.0
  %1456 = vmatpush1.msra.mxu0 0.0
  %1457 = vmatprep.subr.mxu0 0.0
  %1458 = vmatpush1.msra.mxu0 0.0
  %1459 = vmatprep.subr.mxu0 0.0
  %1460 = vmatpush1.msra.mxu0 0.0
  %1461 = vmatprep.subr.mxu0 0.0
  %1462 = vmatpush1.msra.mxu0 0.0
  %1463 = vmatprep.subr.mxu0 0.0
  %1464 = vmatpush1.msra.mxu0 0.0
  %1465 = vmatprep.subr.mxu0 0.0
  %1466 = vmatpush1.msra.mxu0 0.0
  %1467 = vmatprep.subr.mxu0 0.0
  %1468 = vmatpush1.msra.mxu0 0.0
  %1469 = vmatprep.subr.mxu0 0.0
  %1470 = vmatpush1.msra.mxu0 0.0
  %1471 = vmatprep.subr.mxu0 0.0
  %1472 = vmatpush1.msra.mxu0 0.0
  %1473 = vmatprep.subr.mxu0 0.0
  %1474 = vmatpush1.msra.mxu0 0.0
  %1475 = vmatprep.subr.mxu0 0.0
  %1476 = vmatpush1.msra.mxu0 0.0
  %1477 = vmatprep.subr.mxu0 0.0
  %1478 = vmatpush1.msra.mxu0 0.0
  %1479 = vmatprep.subr.mxu0 0.0
  %1480 = vmatpush1.msra.mxu0 0.0
  %1481 = vmatprep.subr.mxu0 0.0
  %1482 = vmatpush1.msra.mxu0 0.0
  %1483 = vmatprep.subr.mxu0 0.0
  %1484 = vmatpush1.msra.mxu0 0.0
  %1485 = vmatprep.subr.mxu0 0.0
  %1486 = vmatpush1.msra.mxu0 0.0
  %1487 = vmatprep.subr.mxu0 0.0
  %1488 = vmatpush1.msra.mxu0 0.0
  %1489 = vmatprep.subr.mxu0 0.0
  %1490 = vmatpush1.msra.mxu0 0.0
  %1491 = vmatprep.subr.mxu0 0.0
  %1492 = vmatpush1.msra.mxu0 0.0
  %1493 = vmatprep.subr.mxu0 0.0
  %1494 = vmatpush1.msra.mxu0 0.0
  %1495 = vmatprep.subr.mxu0 0.0
  %1496 = vmatpush1.msra.mxu0 0.0
  %1497 = vmatprep.subr.mxu0 0.0
  %1498 = vmatpush1.msra.mxu0 0.0
  %1499 = vmatprep.subr.mxu0 0.0
  %1500 = vmatpush1.msra.mxu0 0.0
  %1501 = vmatprep.subr.mxu0 0.0
  %1502 = vmatpush1.msra.mxu0 0.0
  %1503 = vmatprep.subr.mxu0 0.0
  %1504 = vmatpush1.msra.mxu0 0.0
  %1505 = vmatprep.subr.mxu0 0.0
  %1506 = vmatpush1.msra.mxu0 0.0
  %1507 = vmatprep.subr.mxu0 0.0
  %1508 = vmatpush1.msra.mxu0 0.0
  %1509 = vmatprep.mubr.f32.mxu0 0.0
  %1510 = vmatmul.mubr.f32.gmra.mrb[0].mxu0 %v1422
  %v1511 = vpop.f32.mrb[0].mxu0
  %v1512 = vadd.f32 0.0, %v1511
  %v1513 = vpop.f32.mrb[0].mxu0
  %1514 = vmatprep.mubr.f32.mxu0 0.0
  %1515 = vmatmul.mubr.f32.gmra.mrb[0].mxu0 %v1425
  %v1516 = vpop.f32.mrb[0].mxu0
  %v1517 = vadd.f32 0.0, %v1516
  %v1518 = vpop.f32.mrb[0].mxu0
  %1519 = vmatprep.mubr.f32.mxu0 0.0
  %1520 = vmatmul.mubr.f32.gmra.mrb[0].mxu0 %v1428
  %v1521 = vpop.f32.mrb[0].mxu0
  %v1522 = vadd.f32 0.0, %v1521
  %v1523 = vpop.f32.mrb[0].mxu0
  %1524 = vmatprep.mubr.f32.mxu0 0.0
  %1525 = vmatmul.mubr.f32.gmra.mrb[0].mxu0 %v1431
  %v1526 = vpop.f32.mrb[0].mxu0
  %v1527 = vadd.f32 0.0, %v1526
  %v1528 = vpop.f32.mrb[0].mxu0
  %1529 = vmatprep.mubr.f32.mxu0 0.0
  %1530 = vmatmul.mubr.f32.gmra.mrb[0].mxu0 %v1434
  %v1531 = vpop.f32.mrb[0].mxu0
  %v1532 = vadd.f32 0.0, %v1531
  %v1533 = vpop.f32.mrb[0].mxu0
  %1534 = vmatprep.mubr.f32.mxu0 0.0
  %1535 = vmatmul.mubr.f32.gmra.mrb[0].mxu0 %v1437
  %v1536 = vpop.f32.mrb[0].mxu0
  %v1537 = vadd.f32 0.0, %v1536
  %v1538 = vpop.f32.mrb[0].mxu0
  %1539 = vmatprep.mubr.f32.mxu0 0.0
  %1540 = vmatmul.mubr.f32.gmra.mrb[0].mxu0 %v1440
  %v1541 = vpop.f32.mrb[0].mxu0
  %v1542 = vadd.f32 0.0, %v1541
  %v1543 = vpop.f32.mrb[0].mxu0
  %1544 = vmatprep.mubr.f32.mxu0 0.0
  %1545 = vmatmul.mubr.f32.gmra.mrb[0].mxu0 %v1443
  %v1546 = vpop.f32.mrb[0].mxu0
  %v1547 = vadd.f32 0.0, %v1546
  %v1548 = vpop.f32.mrb[0].mxu0
  %1549 = vdwg.mxu0
  %v1550 = vmul.f32 %v1512, %v41
  %v1551 = vmul.f32 %v1517, %v42
  %v1552 = vmul.f32 %v1522, %v43
  %v1553 = vmul.f32 %v1527, %v44
  %v1554 = vmul.f32 %v1532, %v45
  %v1555 = vmul.f32 %v1537, %v46
  %v1556 = vmul.f32 %v1542, %v47
  %v1557 = vmul.f32 %v1547, %v48
  %v1558 = vadd.f32 %v1550, %v1552
  %v1559 = vadd.f32 %v1551, %v1553
  %v1560 = vadd.f32 %v1558, %v1554
  %v1561 = vadd.f32 %v1559, %v1555
  %v1562 = vadd.f32 %v1560, %v1556
  %v1563 = vadd.f32 %v1561, %v1557
  %v1564 = vld [vmem:[%s7 + $0xf] sm:$0x1]
  %v1565 = vlaneseq
  %v1566 = vshrl.u32 %v1565, 7
  %v1567 = vsub.s32 0, %v1566
  %v1568 = vrot.slane %v1564, %v1567
  %1573 = vrot.lane.b32.xlu0 %v1048, 32
  %v1574 = vpop.permute.xlu0 %1573
  %1575 = vrot.lane.b32.xlu0 %v1049, 32
  %v1576 = vpop.permute.xlu0 %1575
  %1577 = vrot.lane.b32.xlu0 %v1050, 32
  %v1578 = vpop.permute.xlu0 %1577
  %1579 = vrot.lane.b32.xlu0 %v1051, 32
  %v1580 = vpop.permute.xlu0 %1579
  %v1586 = vsel %vm159, %v1562, 0
  %v1589 = vsel %vm159, %v1563, 0
  %1591 = vmatprep.subr.mxu0 0.0
  %1592 = vmatpush1.msra.mxu0 %v1574
  %1593 = vmatprep.subr.mxu0 0.0
  %1594 = vmatpush1.msra.mxu0 %v1576
  %1595 = vmatprep.subr.mxu0 0.0
  %1596 = vmatpush1.msra.mxu0 %v1578
  %1597 = vmatprep.subr.mxu0 0.0
  %1598 = vmatpush1.msra.mxu0 %v1580
  %1599 = vmatprep.subr.mxu0 0.0
  %1600 = vmatpush1.msra.mxu0 0.0
  %1601 = vmatprep.subr.mxu0 0.0
  %1602 = vmatpush1.msra.mxu0 0.0
  %1603 = vmatprep.subr.mxu0 0.0
  %1604 = vmatpush1.msra.mxu0 0.0
  %1605 = vmatprep.subr.mxu0 0.0
  %1606 = vmatpush1.msra.mxu0 0.0
  %1607 = vmatprep.subr.mxu0 0.0
  %1608 = vmatpush1.msra.mxu0 0.0
  %1609 = vmatprep.subr.mxu0 0.0
  %1610 = vmatpush1.msra.mxu0 0.0
  %1611 = vmatprep.subr.mxu0 0.0
  %1612 = vmatpush1.msra.mxu0 0.0
  %1613 = vmatprep.subr.mxu0 0.0
  %1614 = vmatpush1.msra.mxu0 0.0
  %1615 = vmatprep.subr.mxu0 0.0
  %1616 = vmatpush1.msra.mxu0 0.0
  %1617 = vmatprep.subr.mxu0 0.0
  %1618 = vmatpush1.msra.mxu0 0.0
  %1619 = vmatprep.subr.mxu0 0.0
  %1620 = vmatpush1.msra.mxu0 0.0
  %1621 = vmatprep.subr.mxu0 0.0
  %1622 = vmatpush1.msra.mxu0 0.0
  %1623 = vmatprep.subr.mxu0 0.0
  %1624 = vmatpush1.msra.mxu0 0.0
  %1625 = vmatprep.subr.mxu0 0.0
  %1626 = vmatpush1.msra.mxu0 0.0
  %1627 = vmatprep.subr.mxu0 0.0
  %1628 = vmatpush1.msra.mxu0 0.0
  %1629 = vmatprep.subr.mxu0 0.0
  %1630 = vmatpush1.msra.mxu0 0.0
  %1631 = vmatprep.subr.mxu0 0.0
  %1632 = vmatpush1.msra.mxu0 0.0
  %1633 = vmatprep.subr.mxu0 0.0
  %1634 = vmatpush1.msra.mxu0 0.0
  %1635 = vmatprep.subr.mxu0 0.0
  %1636 = vmatpush1.msra.mxu0 0.0
  %1637 = vmatprep.subr.mxu0 0.0
  %1638 = vmatpush1.msra.mxu0 0.0
  %1639 = vmatprep.subr.mxu0 0.0
  %1640 = vmatpush1.msra.mxu0 0.0
  %1641 = vmatprep.subr.mxu0 0.0
  %1642 = vmatpush1.msra.mxu0 0.0
  %1643 = vmatprep.subr.mxu0 0.0
  %1644 = vmatpush1.msra.mxu0 0.0
  %1645 = vmatprep.subr.mxu0 0.0
  %1646 = vmatpush1.msra.mxu0 0.0
  %1647 = vmatprep.subr.mxu0 0.0
  %1648 = vmatpush1.msra.mxu0 0.0
  %1649 = vmatprep.subr.mxu0 0.0
  %1650 = vmatpush1.msra.mxu0 0.0
  %1651 = vmatprep.subr.mxu0 0.0
  %1652 = vmatpush1.msra.mxu0 0.0
  %1653 = vmatprep.subr.mxu0 0.0
  %1654 = vmatpush1.msra.mxu0 0.0
  %1655 = vmatprep.mubr.f32.mxu0 0.0
  %1656 = vmatmul.mubr.f32.gmra.mrb[0].mxu0 %v1586
  %v1657 = vpop.f32.mrb[0].mxu0
  %v1658 = vadd.f32 %v1568, %v1657
  %v1659 = vpop.f32.mrb[0].mxu0
  %1660 = vmatprep.mubr.f32.mxu0 0.0
  %1661 = vmatmul.mubr.f32.gmra.mrb[0].mxu0 %v1589
  %v1662 = vpop.f32.mrb[0].mxu0
  %v1663 = vadd.f32 %v1568, %v1662
  %v1664 = vpop.f32.mrb[0].mxu0
  %1665 = vdwg.mxu0
  %v1666 = vadd.f32 %v1045, %v1658
  %v1667 = vadd.f32 %v1046, %v1663
  %v1668 = vld [vmem:[%s7 + $0x10] sm:$0x1]
  %v1669 = vld [vmem:[%s7 + $0x11] sm:$0x1]
  %v1670 = vsel %vm159, %v1666, 0.0
  %1671 = vadd.xlane.f32.xlu0 %v1670
  %v1672 = vpop.xlane.xlu0 %1671
  %v1673 = vsel %vm159, %v1667, 0.0
  %1674 = vadd.xlane.f32.xlu0 %v1673
  %v1675 = vpop.xlane.xlu0 %1674
  %v1676 = vmul.f32 %v1672, %v785
  %v1677 = vmul.f32 %v1675, %v785
  %v1678 = vsub.f32 %v1666, %v1676
  %v1679 = vsub.f32 %v1667, %v1677
  %v1680 = vmul.f32 %v1678, %v1678
  %v1681 = vmul.f32 %v1679, %v1679
  %v1682 = vsel %vm159, %v1680, 0.0
  %1683 = vadd.xlane.f32.xlu0 %v1682
  %v1684 = vpop.xlane.xlu0 %1683
  %v1685 = vsel %vm159, %v1681, 0.0
  %1686 = vadd.xlane.f32.xlu0 %v1685
  %v1687 = vpop.xlane.xlu0 %1686
  %v1688 = vmul.f32 %v1684, %v785
  %v1689 = vmul.f32 %v1687, %v785
  %v1690 = vadd.f32 %v1688, 1e-05
  %v1691 = vadd.f32 %v1689, 1e-05
  %v1692 = vrsqrt.pop %v1690
  %v1693 = vrsqrt.pop %v1691
  %v1694 = vmul.f32 %v1678, %v1692
  %v1695 = vmul.f32 %v1679, %v1693
  %v1696 = vlaneseq
  %v1697 = vshrl.u32 %v1696, 7
  %v1698 = vsub.s32 0, %v1697
  %v1699 = vrot.slane %v1668, %v1698
  %v1700 = vmul.f32 %v1694, %v1699
  %v1701 = vmul.f32 %v1695, %v1699
  %v1702 = vlaneseq
  %v1703 = vshrl.u32 %v1702, 7
  %v1704 = vsub.s32 0, %v1703
  %v1705 = vrot.slane %v1669, %v1704
  %v1706 = vadd.f32 %v1700, %v1705
  %v1707 = vadd.f32 %v1701, %v1705
  %s1708 = scalar_lea.vmem %s4, 32
  %v1709 = vld [vmem:[%s1708] sm:$0xff]
  %v1710 = vld [vmem:[%s1708 + $0x8] sm:$0xff]
  %v1711 = vld [vmem:[%s1708 + $0x10] sm:$0xff]
  %v1712 = vld [vmem:[%s1708 + $0x18] sm:$0xff]
  %v1713 = vld [vmem:[%s8 + $0x1] sm:$0x1]
  %v1714 = vlaneseq
  %v1715 = vshrl.u32 %v1714, 7
  %v1716 = vsub.s32 0, %v1715
  %v1717 = vrot.slane %v1713, %v1716
  %v1719 = vsel %vm159, %v1706, 0
  %v1722 = vsel %vm159, %v1707, 0
  %1724 = vmatprep.subr.mxu0 0.0
  %1725 = vmatpush1.msra.mxu0 %v1709
  %1726 = vmatprep.subr.mxu0 0.0
  %1727 = vmatpush1.msra.mxu0 %v1710
  %1728 = vmatprep.subr.mxu0 0.0
  %1729 = vmatpush1.msra.mxu0 %v1711
  %1730 = vmatprep.subr.mxu0 0.0
  %1731 = vmatpush1.msra.mxu0 %v1712
  %1732 = vmatprep.subr.mxu0 0.0
  %1733 = vmatpush1.msra.mxu0 0.0
  %1734 = vmatprep.subr.mxu0 0.0
  %1735 = vmatpush1.msra.mxu0 0.0
  %1736 = vmatprep.subr.mxu0 0.0
  %1737 = vmatpush1.msra.mxu0 0.0
  %1738 = vmatprep.subr.mxu0 0.0
  %1739 = vmatpush1.msra.mxu0 0.0
  %1740 = vmatprep.subr.mxu0 0.0
  %1741 = vmatpush1.msra.mxu0 0.0
  %1742 = vmatprep.subr.mxu0 0.0
  %1743 = vmatpush1.msra.mxu0 0.0
  %1744 = vmatprep.subr.mxu0 0.0
  %1745 = vmatpush1.msra.mxu0 0.0
  %1746 = vmatprep.subr.mxu0 0.0
  %1747 = vmatpush1.msra.mxu0 0.0
  %1748 = vmatprep.subr.mxu0 0.0
  %1749 = vmatpush1.msra.mxu0 0.0
  %1750 = vmatprep.subr.mxu0 0.0
  %1751 = vmatpush1.msra.mxu0 0.0
  %1752 = vmatprep.subr.mxu0 0.0
  %1753 = vmatpush1.msra.mxu0 0.0
  %1754 = vmatprep.subr.mxu0 0.0
  %1755 = vmatpush1.msra.mxu0 0.0
  %1756 = vmatprep.subr.mxu0 0.0
  %1757 = vmatpush1.msra.mxu0 0.0
  %1758 = vmatprep.subr.mxu0 0.0
  %1759 = vmatpush1.msra.mxu0 0.0
  %1760 = vmatprep.subr.mxu0 0.0
  %1761 = vmatpush1.msra.mxu0 0.0
  %1762 = vmatprep.subr.mxu0 0.0
  %1763 = vmatpush1.msra.mxu0 0.0
  %1764 = vmatprep.subr.mxu0 0.0
  %1765 = vmatpush1.msra.mxu0 0.0
  %1766 = vmatprep.subr.mxu0 0.0
  %1767 = vmatpush1.msra.mxu0 0.0
  %1768 = vmatprep.subr.mxu0 0.0
  %1769 = vmatpush1.msra.mxu0 0.0
  %1770 = vmatprep.subr.mxu0 0.0
  %1771 = vmatpush1.msra.mxu0 0.0
  %1772 = vmatprep.subr.mxu0 0.0
  %1773 = vmatpush1.msra.mxu0 0.0
  %1774 = vmatprep.subr.mxu0 0.0
  %1775 = vmatpush1.msra.mxu0 0.0
  %1776 = vmatprep.subr.mxu0 0.0
  %1777 = vmatpush1.msra.mxu0 0.0
  %1778 = vmatprep.subr.mxu0 0.0
  %1779 = vmatpush1.msra.mxu0 0.0
  %1780 = vmatprep.subr.mxu0 0.0
  %1781 = vmatpush1.msra.mxu0 0.0
  %1782 = vmatprep.subr.mxu0 0.0
  %1783 = vmatpush1.msra.mxu0 0.0
  %1784 = vmatprep.subr.mxu0 0.0
  %1785 = vmatpush1.msra.mxu0 0.0
  %1786 = vmatprep.subr.mxu0 0.0
  %1787 = vmatpush1.msra.mxu0 0.0
  %1788 = vmatprep.mubr.f32.mxu0 0.0
  %1789 = vmatmul.mubr.f32.gmra.mrb[0].mxu0 %v1719
  %v1790 = vpop.f32.mrb[0].mxu0
  %v1791 = vadd.f32 %v1717, %v1790
  %v1792 = vpop.f32.mrb[0].mxu0
  %1793 = vmatprep.mubr.f32.mxu0 0.0
  %1794 = vmatmul.mubr.f32.gmra.mrb[0].mxu0 %v1722
  %v1795 = vpop.f32.mrb[0].mxu0
  %v1796 = vadd.f32 %v1717, %v1795
  %v1797 = vpop.f32.mrb[0].mxu0
  %1798 = vdwg.mxu0
  %v1799 = vmax.f32 %v1791, 0.0
  %v1800 = vmax.f32 %v1796, 0.0
  %s1801 = scalar_lea.vmem %s5, 64
  %v1802 = vld [vmem:[%s1801] sm:$0xff]
  %v1803 = vld [vmem:[%s1801 + $0x8] sm:$0xff]
  %v1804 = vld [vmem:[%s1801 + $0x10] sm:$0xff]
  %v1805 = vld [vmem:[%s1801 + $0x18] sm:$0xff]
  %v1806 = vld [vmem:[%s1801 + $0x20] sm:$0xff]
  %v1807 = vld [vmem:[%s1801 + $0x28] sm:$0xff]
  %v1808 = vld [vmem:[%s1801 + $0x30] sm:$0xff]
  %v1809 = vld [vmem:[%s1801 + $0x38] sm:$0xff]
  %v1810 = vld [vmem:[%s7 + $0x12] sm:$0x1]
  %v1811 = vlaneseq
  %v1812 = vshrl.u32 %v1811, 7
  %v1813 = vsub.s32 0, %v1812
  %v1814 = vrot.slane %v1810, %v1813
  %v1816 = vsel %vm923, %v1799, 0
  %v1819 = vsel %vm923, %v1800, 0
  %1821 = vmatprep.subr.mxu0 0.0
  %1822 = vmatpush1.msra.mxu0 %v1802
  %1823 = vmatprep.subr.mxu0 0.0
  %1824 = vmatpush1.msra.mxu0 %v1803
  %1825 = vmatprep.subr.mxu0 0.0
  %1826 = vmatpush1.msra.mxu0 %v1804
  %1827 = vmatprep.subr.mxu0 0.0
  %1828 = vmatpush1.msra.mxu0 %v1805
  %1829 = vmatprep.subr.mxu0 0.0
  %1830 = vmatpush1.msra.mxu0 %v1806
  %1831 = vmatprep.subr.mxu0 0.0
  %1832 = vmatpush1.msra.mxu0 %v1807
  %1833 = vmatprep.subr.mxu0 0.0
  %1834 = vmatpush1.msra.mxu0 %v1808
  %1835 = vmatprep.subr.mxu0 0.0
  %1836 = vmatpush1.msra.mxu0 %v1809
  %1837 = vmatprep.subr.mxu0 0.0
  %1838 = vmatpush1.msra.mxu0 0.0
  %1839 = vmatprep.subr.mxu0 0.0
  %1840 = vmatpush1.msra.mxu0 0.0
  %1841 = vmatprep.subr.mxu0 0.0
  %1842 = vmatpush1.msra.mxu0 0.0
  %1843 = vmatprep.subr.mxu0 0.0
  %1844 = vmatpush1.msra.mxu0 0.0
  %1845 = vmatprep.subr.mxu0 0.0
  %1846 = vmatpush1.msra.mxu0 0.0
  %1847 = vmatprep.subr.mxu0 0.0
  %1848 = vmatpush1.msra.mxu0 0.0
  %1849 = vmatprep.subr.mxu0 0.0
  %1850 = vmatpush1.msra.mxu0 0.0
  %1851 = vmatprep.subr.mxu0 0.0
  %1852 = vmatpush1.msra.mxu0 0.0
  %1853 = vmatprep.subr.mxu0 0.0
  %1854 = vmatpush1.msra.mxu0 0.0
  %1855 = vmatprep.subr.mxu0 0.0
  %1856 = vmatpush1.msra.mxu0 0.0
  %1857 = vmatprep.subr.mxu0 0.0
  %1858 = vmatpush1.msra.mxu0 0.0
  %1859 = vmatprep.subr.mxu0 0.0
  %1860 = vmatpush1.msra.mxu0 0.0
  %1861 = vmatprep.subr.mxu0 0.0
  %1862 = vmatpush1.msra.mxu0 0.0
  %1863 = vmatprep.subr.mxu0 0.0
  %1864 = vmatpush1.msra.mxu0 0.0
  %1865 = vmatprep.subr.mxu0 0.0
  %1866 = vmatpush1.msra.mxu0 0.0
  %1867 = vmatprep.subr.mxu0 0.0
  %1868 = vmatpush1.msra.mxu0 0.0
  %1869 = vmatprep.subr.mxu0 0.0
  %1870 = vmatpush1.msra.mxu0 0.0
  %1871 = vmatprep.subr.mxu0 0.0
  %1872 = vmatpush1.msra.mxu0 0.0
  %1873 = vmatprep.subr.mxu0 0.0
  %1874 = vmatpush1.msra.mxu0 0.0
  %1875 = vmatprep.subr.mxu0 0.0
  %1876 = vmatpush1.msra.mxu0 0.0
  %1877 = vmatprep.subr.mxu0 0.0
  %1878 = vmatpush1.msra.mxu0 0.0
  %1879 = vmatprep.subr.mxu0 0.0
  %1880 = vmatpush1.msra.mxu0 0.0
  %1881 = vmatprep.subr.mxu0 0.0
  %1882 = vmatpush1.msra.mxu0 0.0
  %1883 = vmatprep.subr.mxu0 0.0
  %1884 = vmatpush1.msra.mxu0 0.0
  %1885 = vmatprep.mubr.f32.mxu0 0.0
  %1886 = vmatmul.mubr.f32.gmra.mrb[0].mxu0 %v1816
  %v1887 = vpop.f32.mrb[0].mxu0
  %v1888 = vadd.f32 %v1814, %v1887
  %v1889 = vpop.f32.mrb[0].mxu0
  %1890 = vmatprep.mubr.f32.mxu0 0.0
  %1891 = vmatmul.mubr.f32.gmra.mrb[0].mxu0 %v1819
  %v1892 = vpop.f32.mrb[0].mxu0
  %v1893 = vadd.f32 %v1814, %v1892
  %v1894 = vpop.f32.mrb[0].mxu0
  %1895 = vdwg.mxu0
  %v1896 = vadd.f32 %v1706, %v1888
  %v1897 = vadd.f32 %v1707, %v1893
  %v1898 = vld [vmem:[%s7 + $0x13] sm:$0x1]
  %v1899 = vld [vmem:[%s7 + $0x14] sm:$0x1]
  %v1900 = vsel %vm159, %v1896, 0.0
  %1901 = vadd.xlane.f32.xlu0 %v1900
  %v1902 = vpop.xlane.xlu0 %1901
  %v1903 = vsel %vm159, %v1897, 0.0
  %1904 = vadd.xlane.f32.xlu0 %v1903
  %v1905 = vpop.xlane.xlu0 %1904
  %v1906 = vmul.f32 %v1902, %v785
  %v1907 = vmul.f32 %v1905, %v785
  %v1908 = vsub.f32 %v1896, %v1906
  %v1909 = vsub.f32 %v1897, %v1907
  %v1910 = vmul.f32 %v1908, %v1908
  %v1911 = vmul.f32 %v1909, %v1909
  %v1912 = vsel %vm159, %v1910, 0.0
  %1913 = vadd.xlane.f32.xlu0 %v1912
  %v1914 = vpop.xlane.xlu0 %1913
  %v1915 = vsel %vm159, %v1911, 0.0
  %1916 = vadd.xlane.f32.xlu0 %v1915
  %v1917 = vpop.xlane.xlu0 %1916
  %v1918 = vmul.f32 %v1914, %v785
  %v1919 = vmul.f32 %v1917, %v785
  %v1920 = vadd.f32 %v1918, 1e-05
  %v1921 = vadd.f32 %v1919, 1e-05
  %v1922 = vrsqrt.pop %v1920
  %v1923 = vrsqrt.pop %v1921
  %v1924 = vmul.f32 %v1908, %v1922
  %v1925 = vmul.f32 %v1909, %v1923
  %v1926 = vlaneseq
  %v1927 = vshrl.u32 %v1926, 7
  %v1928 = vsub.s32 0, %v1927
  %v1929 = vrot.slane %v1898, %v1928
  %v1930 = vmul.f32 %v1924, %v1929
  %v1931 = vmul.f32 %v1925, %v1929
  %v1932 = vlaneseq
  %v1933 = vshrl.u32 %v1932, 7
  %v1934 = vsub.s32 0, %v1933
  %v1935 = vrot.slane %v1899, %v1934
  %v1936 = vadd.f32 %v1930, %v1935
  %v1937 = vadd.f32 %v1931, %v1935
  %v1938 = vld [vmem:[%s7 + $0x1] sm:$0x1]
  %v1939 = vld [vmem:[%s7 + $0x2] sm:$0x1]
  %v1940 = vsel %vm159, %v1936, 0.0
  %1941 = vadd.xlane.f32.xlu0 %v1940
  %v1942 = vpop.xlane.xlu0 %1941
  %v1943 = vsel %vm159, %v1937, 0.0
  %1944 = vadd.xlane.f32.xlu0 %v1943
  %v1945 = vpop.xlane.xlu0 %1944
  %v1946 = vmul.f32 %v1942, %v785
  %v1947 = vmul.f32 %v1945, %v785
  %v1948 = vsub.f32 %v1936, %v1946
  %v1949 = vsub.f32 %v1937, %v1947
  %v1950 = vmul.f32 %v1948, %v1948
  %v1951 = vmul.f32 %v1949, %v1949
  %v1952 = vsel %vm159, %v1950, 0.0
  %1953 = vadd.xlane.f32.xlu0 %v1952
  %v1954 = vpop.xlane.xlu0 %1953
  %v1955 = vsel %vm159, %v1951, 0.0
  %1956 = vadd.xlane.f32.xlu0 %v1955
  %v1957 = vpop.xlane.xlu0 %1956
  %v1958 = vmul.f32 %v1954, %v785
  %v1959 = vmul.f32 %v1957, %v785
  %v1960 = vadd.f32 %v1958, 1e-05
  %v1961 = vadd.f32 %v1959, 1e-05
  %v1962 = vrsqrt.pop %v1960
  %v1963 = vrsqrt.pop %v1961
  %v1964 = vmul.f32 %v1948, %v1962
  %v1965 = vmul.f32 %v1949, %v1963
  %v1966 = vlaneseq
  %v1967 = vshrl.u32 %v1966, 7
  %v1968 = vsub.s32 0, %v1967
  %v1969 = vrot.slane %v1938, %v1968
  %v1970 = vmul.f32 %v1964, %v1969
  %v1971 = vmul.f32 %v1965, %v1969
  %v1972 = vlaneseq
  %v1973 = vshrl.u32 %v1972, 7
  %v1974 = vsub.s32 0, %v1973
  %v1975 = vrot.slane %v1939, %v1974
  %v1976 = vadd.f32 %v1970, %v1975
  %v1977 = vadd.f32 %v1971, %v1975
  %s1978 = scalar_lea.vmem %s4, 64
  %v1979 = vld [vmem:[%s1978] sm:$0xff]
  %v1980 = vld [vmem:[%s1978 + $0x8] sm:$0xff]
  %v1981 = vld [vmem:[%s1978 + $0x10] sm:$0xff]
  %v1982 = vld [vmem:[%s1978 + $0x18] sm:$0xff]
  %v1983 = vld [vmem:[%s8 + $0x2] sm:$0x1]
  %v1984 = vlaneseq
  %v1985 = vshrl.u32 %v1984, 7
  %v1986 = vsub.s32 0, %v1985
  %v1987 = vrot.slane %v1983, %v1986
  %v1989 = vsel %vm159, %v1976, 0
  %v1992 = vsel %vm159, %v1977, 0
  %1994 = vmatprep.subr.mxu0 0.0
  %1995 = vmatpush1.msra.mxu0 %v1979
  %1996 = vmatprep.subr.mxu0 0.0
  %1997 = vmatpush1.msra.mxu0 %v1980
  %1998 = vmatprep.subr.mxu0 0.0
  %1999 = vmatpush1.msra.mxu0 %v1981
  %2000 = vmatprep.subr.mxu0 0.0
  %2001 = vmatpush1.msra.mxu0 %v1982
  %2002 = vmatprep.subr.mxu0 0.0
  %2003 = vmatpush1.msra.mxu0 0.0
  %2004 = vmatprep.subr.mxu0 0.0
  %2005 = vmatpush1.msra.mxu0 0.0
  %2006 = vmatprep.subr.mxu0 0.0
  %2007 = vmatpush1.msra.mxu0 0.0
  %2008 = vmatprep.subr.mxu0 0.0
  %2009 = vmatpush1.msra.mxu0 0.0
  %2010 = vmatprep.subr.mxu0 0.0
  %2011 = vmatpush1.msra.mxu0 0.0
  %2012 = vmatprep.subr.mxu0 0.0
  %2013 = vmatpush1.msra.mxu0 0.0
  %2014 = vmatprep.subr.mxu0 0.0
  %2015 = vmatpush1.msra.mxu0 0.0
  %2016 = vmatprep.subr.mxu0 0.0
  %2017 = vmatpush1.msra.mxu0 0.0
  %2018 = vmatprep.subr.mxu0 0.0
  %2019 = vmatpush1.msra.mxu0 0.0
  %2020 = vmatprep.subr.mxu0 0.0
  %2021 = vmatpush1.msra.mxu0 0.0
  %2022 = vmatprep.subr.mxu0 0.0
  %2023 = vmatpush1.msra.mxu0 0.0
  %2024 = vmatprep.subr.mxu0 0.0
  %2025 = vmatpush1.msra.mxu0 0.0
  %2026 = vmatprep.subr.mxu0 0.0
  %2027 = vmatpush1.msra.mxu0 0.0
  %2028 = vmatprep.subr.mxu0 0.0
  %2029 = vmatpush1.msra.mxu0 0.0
  %2030 = vmatprep.subr.mxu0 0.0
  %2031 = vmatpush1.msra.mxu0 0.0
  %2032 = vmatprep.subr.mxu0 0.0
  %2033 = vmatpush1.msra.mxu0 0.0
  %2034 = vmatprep.subr.mxu0 0.0
  %2035 = vmatpush1.msra.mxu0 0.0
  %2036 = vmatprep.subr.mxu0 0.0
  %2037 = vmatpush1.msra.mxu0 0.0
  %2038 = vmatprep.subr.mxu0 0.0
  %2039 = vmatpush1.msra.mxu0 0.0
  %2040 = vmatprep.subr.mxu0 0.0
  %2041 = vmatpush1.msra.mxu0 0.0
  %2042 = vmatprep.subr.mxu0 0.0
  %2043 = vmatpush1.msra.mxu0 0.0
  %2044 = vmatprep.subr.mxu0 0.0
  %2045 = vmatpush1.msra.mxu0 0.0
  %2046 = vmatprep.subr.mxu0 0.0
  %2047 = vmatpush1.msra.mxu0 0.0
  %2048 = vmatprep.subr.mxu0 0.0
  %2049 = vmatpush1.msra.mxu0 0.0
  %2050 = vmatprep.subr.mxu0 0.0
  %2051 = vmatpush1.msra.mxu0 0.0
  %2052 = vmatprep.subr.mxu0 0.0
  %2053 = vmatpush1.msra.mxu0 0.0
  %2054 = vmatprep.subr.mxu0 0.0
  %2055 = vmatpush1.msra.mxu0 0.0
  %2056 = vmatprep.subr.mxu0 0.0
  %2057 = vmatpush1.msra.mxu0 0.0
  %2058 = vmatprep.mubr.f32.mxu0 0.0
  %2059 = vmatmul.mubr.f32.gmra.mrb[0].mxu0 %v1989
  %v2060 = vpop.f32.mrb[0].mxu0
  %v2061 = vadd.f32 %v1987, %v2060
  %v2062 = vpop.f32.mrb[0].mxu0
  %2063 = vmatprep.mubr.f32.mxu0 0.0
  %2064 = vmatmul.mubr.f32.gmra.mrb[0].mxu0 %v1992
  %v2065 = vpop.f32.mrb[0].mxu0
  %v2066 = vadd.f32 %v1987, %v2065
  %v2067 = vpop.f32.mrb[0].mxu0
  %2068 = vdwg.mxu0
  %v2069 = vmax.f32 %v2061, 0.0
  %v2070 = vmax.f32 %v2066, 0.0
  %v2071 = vld [vmem:[%s6] sm:$0xff]
  %v2072 = vld [vmem:[%s6 + $0x8] sm:$0xff]
  %v2073 = vld [vmem:[%s6 + $0x10] sm:$0xff]
  %v2074 = vld [vmem:[%s6 + $0x18] sm:$0xff]
  %v2075 = vld [vmem:[%s6 + $0x20] sm:$0xff]
  %v2076 = vld [vmem:[%s6 + $0x28] sm:$0xff]
  %v2077 = vld [vmem:[%s6 + $0x30] sm:$0xff]
  %v2078 = vld [vmem:[%s6 + $0x38] sm:$0xff]
  %v2079 = vld [vmem:[%s9] sm:$0x1]
  %v2081 = vlaneseq
  %v2082 = vshrl.u32 %v2081, 7
  %v2083 = vsub.s32 0, %v2082
  %v2084 = vrot.slane %v2079, %v2083
  %v2087 = vsel %vm923, %v2069, 0
  %v2090 = vsel %vm923, %v2070, 0
  %2092 = vmatprep.subr.mxu0 0.0
  %2093 = vmatpush1.msra.mxu0 %v2071
  %2094 = vmatprep.subr.mxu0 0.0
  %2095 = vmatpush1.msra.mxu0 %v2072
  %2096 = vmatprep.subr.mxu0 0.0
  %2097 = vmatpush1.msra.mxu0 %v2073
  %2098 = vmatprep.subr.mxu0 0.0
  %2099 = vmatpush1.msra.mxu0 %v2074
  %2100 = vmatprep.subr.mxu0 0.0
  %2101 = vmatpush1.msra.mxu0 %v2075
  %2102 = vmatprep.subr.mxu0 0.0
  %2103 = vmatpush1.msra.mxu0 %v2076
  %2104 = vmatprep.subr.mxu0 0.0
  %2105 = vmatpush1.msra.mxu0 %v2077
  %2106 = vmatprep.subr.mxu0 0.0
  %2107 = vmatpush1.msra.mxu0 %v2078
  %2108 = vmatprep.subr.mxu0 0.0
  %2109 = vmatpush1.msra.mxu0 0.0
  %2110 = vmatprep.subr.mxu0 0.0
  %2111 = vmatpush1.msra.mxu0 0.0
  %2112 = vmatprep.subr.mxu0 0.0
  %2113 = vmatpush1.msra.mxu0 0.0
  %2114 = vmatprep.subr.mxu0 0.0
  %2115 = vmatpush1.msra.mxu0 0.0
  %2116 = vmatprep.subr.mxu0 0.0
  %2117 = vmatpush1.msra.mxu0 0.0
  %2118 = vmatprep.subr.mxu0 0.0
  %2119 = vmatpush1.msra.mxu0 0.0
  %2120 = vmatprep.subr.mxu0 0.0
  %2121 = vmatpush1.msra.mxu0 0.0
  %2122 = vmatprep.subr.mxu0 0.0
  %2123 = vmatpush1.msra.mxu0 0.0
  %2124 = vmatprep.subr.mxu0 0.0
  %2125 = vmatpush1.msra.mxu0 0.0
  %2126 = vmatprep.subr.mxu0 0.0
  %2127 = vmatpush1.msra.mxu0 0.0
  %2128 = vmatprep.subr.mxu0 0.0
  %2129 = vmatpush1.msra.mxu0 0.0
  %2130 = vmatprep.subr.mxu0 0.0
  %2131 = vmatpush1.msra.mxu0 0.0
  %2132 = vmatprep.subr.mxu0 0.0
  %2133 = vmatpush1.msra.mxu0 0.0
  %2134 = vmatprep.subr.mxu0 0.0
  %2135 = vmatpush1.msra.mxu0 0.0
  %2136 = vmatprep.subr.mxu0 0.0
  %2137 = vmatpush1.msra.mxu0 0.0
  %2138 = vmatprep.subr.mxu0 0.0
  %2139 = vmatpush1.msra.mxu0 0.0
  %2140 = vmatprep.subr.mxu0 0.0
  %2141 = vmatpush1.msra.mxu0 0.0
  %2142 = vmatprep.subr.mxu0 0.0
  %2143 = vmatpush1.msra.mxu0 0.0
  %2144 = vmatprep.subr.mxu0 0.0
  %2145 = vmatpush1.msra.mxu0 0.0
  %2146 = vmatprep.subr.mxu0 0.0
  %2147 = vmatpush1.msra.mxu0 0.0
  %2148 = vmatprep.subr.mxu0 0.0
  %2149 = vmatpush1.msra.mxu0 0.0
  %2150 = vmatprep.subr.mxu0 0.0
  %2151 = vmatpush1.msra.mxu0 0.0
  %2152 = vmatprep.subr.mxu0 0.0
  %2153 = vmatpush1.msra.mxu0 0.0
  %2154 = vmatprep.subr.mxu0 0.0
  %2155 = vmatpush1.msra.mxu0 0.0
  %2156 = vmatprep.mubr.f32.mxu0 0.0
  %2157 = vmatmul.mubr.f32.gmra.mrb[0].mxu0 %v2087
  %v2158 = vpop.f32.mrb[0].mxu0
  %v2159 = vadd.f32 %v2084, %v2158
  %v2160 = vpop.f32.mrb[0].mxu0
  %2161 = vmatprep.mubr.f32.mxu0 0.0
  %2162 = vmatmul.mubr.f32.gmra.mrb[0].mxu0 %v2090
  %v2163 = vpop.f32.mrb[0].mxu0
  %v2164 = vadd.f32 %v2084, %v2163
  %v2165 = vpop.f32.mrb[0].mxu0
  %2166 = vdwg.mxu0
  %2167 = vst [vmem:[%s12] sm:$0xff] %v2159
  %2168 = vst [vmem:[%s12 + $0x8] sm:$0xff] %v2164
  // Predicated region
  $region50: #{transformer_encoder.1} parent=0 // pred_check
    _
  $region51: #{transformer_encoder.1} parent=0 // pred_check_branch
    %2170 = sbr.rel (0) target = $region53
  $region52: #{transformer_encoder.1} parent=0 // pred_region
    _
  $region53: #{transformer_encoder.1} parent=0 // pred_fallthru
    _
  // Predicated region
  $region54: #{transformer_encoder.1} parent=0 // pred_check
    _
  $region55: #{transformer_encoder.1} parent=0 // pred_check_branch
    %2172 = sbr.rel (0) target = $region57
  $region56: #{transformer_encoder.1} parent=0 // pred_region
    _
  $region57: #{transformer_encoder.1} parent=0 // pred_fallthru
    _

</llo_original>
